<compile_context>
chip_gen: v6e
topology: v6e:2x2x1
jax: 0.10.0
libtpu: 0.0.40
codegen_flags: <defaults>
</compile_context>

<pallas_src>
import functools

import jax
import jax.numpy as jnp
from jax.experimental import pallas as pl
from jax.experimental.pallas import tpu as pltpu


# ----------------------------------------------------------------------------
# Pallas kernels
# ----------------------------------------------------------------------------
def _conv_bias_relu_kernel(p_ref, w_ref, bias_ref, o_ref):
    """One M-tile of:  relu( patches @ W_scaled + bias ).

    p_ref:    (TM, Kpad)    bf16 im2col patches tile (zero-padded on K)
    w_ref:    (Kpad, Cpad)  bf16 conv weight with BN scale folded in
    bias_ref: (1, Cpad)     f32  BN bias (beta - mean*scale), zero in pad lanes
    o_ref:    (TM, Cpad)    bf16
    """
    acc = jnp.dot(p_ref[...], w_ref[...], preferred_element_type=jnp.float32)
    y = acc + bias_ref[...]
    o_ref[...] = jnp.maximum(y, 0.0).astype(o_ref.dtype)


def _global_avg_pool_kernel(x_ref, o_ref, *, inv_hw):
    """Accumulating spatial mean over a 1-D grid of HW chunks.

    x_ref: (B, THW, Cpad) bf16    o_ref: (B, Cpad) f32 (resident accumulator)
    """
    s = pl.program_id(0)

    @pl.when(s == 0)
    def _():
        o_ref[...] = jnp.zeros_like(o_ref)

    o_ref[...] += jnp.sum(x_ref[...].astype(jnp.float32), axis=1)

    @pl.when(s == pl.num_programs(0) - 1)
    def _():
        o_ref[...] = o_ref[...] * inv_hw


# ----------------------------------------------------------------------------
# Helpers (glue in plain JAX, hot path in Pallas)
# ----------------------------------------------------------------------------
def _round_up(x, m):
    return -(-x // m) * m


def _choose_m_tiling(m):
    """Pick an M tile that is lane/sublane friendly and gives >=2 grid steps
    (v7x megacore) when there is enough work."""
    if m >= 1024:
        tm = 512
    elif m >= 256:
        tm = 256
    else:
        tm = 128
    return _round_up(m, tm), tm


def _im2col_nhwc(x, k, stride, pad):
    """x: (B, H, W, C) -> (B, Ho, Wo, k*k*C), feature order (di, dj, c).
    k/stride/pad MUST be Python ints (static)."""
    B, H, W, C = x.shape
    xp = jnp.pad(x, ((0, 0), (pad, pad), (pad, pad), (0, 0)))
    Hp, Wp = H + 2 * pad, W + 2 * pad
    Ho = (Hp - k) // stride + 1
    Wo = (Wp - k) // stride + 1
    cols = []
    for di in range(k):
        for dj in range(k):
            cols.append(
                xp[:, di : di + stride * Ho : stride, dj : dj + stride * Wo : stride, :]
            )
    return jnp.concatenate(cols, axis=-1), Ho, Wo


def conv_bn_relu(x_nhwc, weight_oikk, bn_scale, bn_bias, *, stride, pad):
    """Fused conv3x3 + BN(eval) + ReLU via im2col + Pallas MXU matmul.

    Returns ((B, Ho, Wo, Cpad) bf16 with zero pad-lanes, actual Cout).
    """
    Cout, Cin, K, _ = weight_oikk.shape
    B = x_nhwc.shape[0]

    # TODO(synk): im2col is still materialized via XLA (now in bf16); a fully fused
    #             implicit-GEMM DMA path would remove this HBM round trip.
    patches, Ho, Wo = _im2col_nhwc(x_nhwc.astype(jnp.bfloat16), K, stride, pad)
    M = B * Ho * Wo
    Kdim = K * K * Cin

    Kpad = _round_up(Kdim, 128)          # lane-dense contraction dim
    Cpad = _round_up(Cout, 128)          # lane-dense output dim (unmasked vst)
    M_pad, TM = _choose_m_tiling(M)

    p2d = patches.reshape(M, Kdim)
    p2d = jnp.pad(p2d, ((0, M_pad - M), (0, Kpad - Kdim))).astype(jnp.bfloat16)

    # (Cout, Cin, kH, kW) -> (kH, kW, Cin, Cout) -> (K*K*Cin, Cout); matches im2col
    # ordering. Fold BN scale into weight columns (in f32), then cast + zero-pad.
    w2d = jnp.transpose(weight_oikk, (2, 3, 1, 0)).reshape(Kdim, Cout)
    w2d = (w2d.astype(jnp.float32) * bn_scale[None, :].astype(jnp.float32))
    w2d = jnp.pad(w2d, ((0, Kpad - Kdim), (0, Cpad - Cout))).astype(jnp.bfloat16)

    bias = jnp.pad(bn_bias.astype(jnp.float32), (0, Cpad - Cout)).reshape(1, Cpad)

    grid = (M_pad // TM,)
    out2d = pl.pallas_call(
        _conv_bias_relu_kernel,
        out_shape=jax.ShapeDtypeStruct((M_pad, Cpad), jnp.bfloat16),
        grid_spec=pltpu.PrefetchScalarGridSpec(
            num_scalar_prefetch=0,
            grid=grid,
            in_specs=[
                pl.BlockSpec((TM, Kpad), lambda i: (i, 0)),
                pl.BlockSpec((Kpad, Cpad), lambda i: (0, 0)),
                pl.BlockSpec((1, Cpad), lambda i: (0, 0)),
            ],
            out_specs=pl.BlockSpec((TM, Cpad), lambda i: (i, 0)),
        ),
        compiler_params=pltpu.CompilerParams(
            dimension_semantics=("parallel",),
            vmem_limit_bytes=32 * 1024 * 1024,
        ),
    )(p2d, w2d, bias)

    y = out2d[:M].reshape(B, Ho, Wo, Cpad)
    return y, Cout


def global_avg_pool(x_nhwc_padded):
    """(B, H, W, Cpad) -> (B, Cpad) mean over spatial dims, tiled over HW chunks."""
    B, H, W, Cpad = x_nhwc_padded.shape
    HW = H * W
    x3 = x_nhwc_padded.reshape(B, HW, Cpad)

    THW = min(512, _round_up(HW, 8))
    HW_pad = _round_up(HW, THW)
    x3 = jnp.pad(x3, ((0, 0), (0, HW_pad - HW), (0, 0)))  # zeros don't change the sum
    n_chunks = HW_pad // THW

    kernel = functools.partial(_global_avg_pool_kernel, inv_hw=1.0 / float(HW))
    return pl.pallas_call(
        kernel,
        out_shape=jax.ShapeDtypeStruct((B, Cpad), jnp.float32),
        grid_spec=pltpu.PrefetchScalarGridSpec(
            num_scalar_prefetch=0,
            grid=(n_chunks,),
            in_specs=[pl.BlockSpec((B, THW, Cpad), lambda s: (0, s, 0))],
            out_specs=pl.BlockSpec((B, Cpad), lambda s: (0, 0)),
        ),
        compiler_params=pltpu.CompilerParams(
            dimension_semantics=("arbitrary",),   # reduction axis
            vmem_limit_bytes=32 * 1024 * 1024,
        ),
    )(x3)


# ----------------------------------------------------------------------------
# Parameter construction (deterministic, no checkpoint loading)
# ----------------------------------------------------------------------------
def _fold_bn(gamma, beta, mean, var, eps=1e-5):
    scale = gamma / jnp.sqrt(var + eps)
    bias = beta - mean * scale
    return scale, bias


def make_params(key, c_in=3, widths=(8, 16, 32)):
    """Returns (params_tuple_of_arrays, strides_tuple_of_static_ints)."""
    params = []
    strides = []
    c_prev = c_in
    for li, c_out in enumerate(widths):
        key, kw, kg, kb, km, kv = jax.random.split(key, 6)
        w = jax.random.normal(kw, (c_out, c_prev, 3, 3), jnp.float32) * 0.1
        gamma = 1.0 + 0.05 * jax.random.normal(kg, (c_out,), jnp.float32)
        beta = 0.05 * jax.random.normal(kb, (c_out,), jnp.float32)
        mean = 0.05 * jax.random.normal(km, (c_out,), jnp.float32)
        var = 1.0 + 0.1 * jax.random.uniform(kv, (c_out,), jnp.float32)
        scale, bias = _fold_bn(gamma, beta, mean, var)
        params.append(dict(w=w, scale=scale, bias=bias))
        strides.append(1 if li == 0 else 2)
        c_prev = c_out
    return tuple(params), tuple(strides)


# ----------------------------------------------------------------------------
# Full forward: ImageEncoder(x) -> (B, C_feat)
# ----------------------------------------------------------------------------
@functools.partial(jax.jit, static_argnums=(2,))
def image_encoder_forward_nchw(x_nchw, params, strides):
    # layout: input is NCHW (PyTorch); compute in NHWC with bf16 intermediates.
    x = jnp.transpose(x_nchw, (0, 2, 3, 1)).astype(jnp.bfloat16)
    n = len(params)
    feat = None
    for li, p in enumerate(params):
        y_pad, c_out = conv_bn_relu(
            x, p["w"], p["scale"], p["bias"], stride=strides[li], pad=1
        )
        if li + 1 < n:
            x = y_pad[..., :c_out]  # drop zero pad-lanes before next layer's im2col
        else:
            # keep pad-lanes (they are exactly zero) so the pool stays lane-dense,
            # then slice the final feature vector.
            feat = global_avg_pool(y_pad)[:, :c_out]
    return feat  # (B, C_feat) — matches global_pool='avg', num_classes=0


# ----------------------------------------------------------------------------
# Pure-JAX f32 reference for correctness check
# ----------------------------------------------------------------------------
def _reference_forward(x_nchw, params, strides):
    x = x_nchw.astype(jnp.float32)
    for p, s in zip(params, strides):
        y = jax.lax.conv_general_dilated(
            x, p["w"], window_strides=(s, s), padding=((1, 1), (1, 1)),
            dimension_numbers=("NCHW", "OIHW", "NCHW"),
        )
        y = y * p["scale"][None, :, None, None] + p["bias"][None, :, None, None]
        x = jnp.maximum(y, 0.0)
    return jnp.mean(x, axis=(2, 3))


if __name__ == "__main__":
    key = jax.random.PRNGKey(0)
    kx, kp = jax.random.split(key)

    B, C, H, W = 2, 3, 16, 16
    x = jax.random.normal(kx, (B, C, H, W), jnp.float32)
    params, strides = make_params(kp, c_in=C, widths=(8, 16, 32))

    out = image_encoder_forward_nchw(x, params, strides)
    out = jax.block_until_ready(out)

    ref = _reference_forward(x, params, strides)
    assert out.shape == (B, 32), out.shape
    err = float(jnp.max(jnp.abs(out.astype(jnp.float32) - ref)))
    # bf16 operands/intermediates vs f32 reference -> loose-but-bug-catching tolerance
    assert err < 3e-2, f"max abs err {err}"
    print("KERNEL_OK")
</pallas_src>

<mosaic_0001>
module attributes {stable_mosaic.version = 11 : i64} {
  func.func @_conv_bias_relu_kernel(%arg0: i32, %arg1: memref<256x128xbf16, #tpu.memory_space<vmem>>, %arg2: memref<128x128xbf16, #tpu.memory_space<vmem>>, %arg3: memref<1x128xf32, #tpu.memory_space<vmem>>, %arg4: memref<256x128xbf16, #tpu.memory_space<vmem>>) attributes {dimension_semantics = [#tpu.dimension_semantics<parallel>], iteration_bounds = array<i64: 2>, scalar_prefetch = 0 : i64, scratch_operands = 0 : i64, tpu.core_type = #tpu.core_type<tc>, window_params = [{transform_indices = @transform_0, window_bounds = array<i64: 256, 128>}, {pipeline_mode = #tpu.pipeline_mode<synchronous>, transform_indices = @transform_1, window_bounds = array<i64: 128, 128>}, {pipeline_mode = #tpu.pipeline_mode<synchronous>, transform_indices = @transform_2, window_bounds = array<i64: 1, 128>}, {transform_indices = @transform_3, window_bounds = array<i64: 256, 128>}]} {
    %c0 = arith.constant 0 : index
    %c0_0 = arith.constant 0 : index
    %0 = vector.load %arg1[%c0, %c0_0] : memref<256x128xbf16, #tpu.memory_space<vmem>>, vector<256x128xbf16>
    %c0_1 = arith.constant 0 : index
    %c0_2 = arith.constant 0 : index
    %1 = vector.load %arg2[%c0_1, %c0_2] : memref<128x128xbf16, #tpu.memory_space<vmem>>, vector<128x128xbf16>
    %cst = arith.constant dense<0.000000e+00> : vector<256x128xf32>
    %2 = tpu.matmul %0, %1, %cst {dimension_numbers = #tpu.dot_dimension_numbers<[1], [0], [0], [1], [0, 0, 1, 1], [], []>} : vector<256x128xbf16>, vector<128x128xbf16>, vector<256x128xf32> -> vector<256x128xf32>
    %c0_3 = arith.constant 0 : index
    %c0_4 = arith.constant 0 : index
    %3 = vector.load %arg3[%c0_3, %c0_4] : memref<1x128xf32, #tpu.memory_space<vmem>>, vector<1x128xf32>
    %4 = vector.broadcast %3 : vector<1x128xf32> to vector<256x128xf32>
    %5 = arith.addf %2, %4 : vector<256x128xf32>
    %cst_5 = arith.constant 0.000000e+00 : f32
    %6 = vector.broadcast %cst_5 : f32 to vector<256x128xf32>
    %7 = arith.maximumf %5, %6 : vector<256x128xf32>
    %8 = arith.truncf %7 : vector<256x128xf32> to vector<256x128xbf16>
    %c0_6 = arith.constant 0 : index
    %c0_7 = arith.constant 0 : index
    %9 = vector.load %arg4[%c0_6, %c0_7] : memref<256x128xbf16, #tpu.memory_space<vmem>>, vector<256x128xbf16>
    tpu.vector_store %arg4[%c0_6, %c0_7], %8 {strides = array<i32>} : memref<256x128xbf16, #tpu.memory_space<vmem>>, vector<256x128xbf16>,
    return
  }
  func.func @transform_0(%arg0: i32) -> (i32, i32) {
    %c0_i32 = arith.constant 0 : i32
    %c0_i32_0 = arith.constant 0 : i32
    return %arg0, %c0_i32 : i32, i32
  }
  func.func @transform_1(%arg0: i32) -> (i32, i32) {
    %c0_i32 = arith.constant 0 : i32
    %c0_i32_0 = arith.constant 0 : i32
    %c0_i32_1 = arith.constant 0 : i32
    return %c0_i32, %c0_i32_0 : i32, i32
  }
  func.func @transform_2(%arg0: i32) -> (i32, i32) {
    %c0_i32 = arith.constant 0 : i32
    %c0_i32_0 = arith.constant 0 : i32
    %c0_i32_1 = arith.constant 0 : i32
    return %c0_i32, %c0_i32_0 : i32, i32
  }
  func.func @transform_3(%arg0: i32) -> (i32, i32) {
    %c0_i32 = arith.constant 0 : i32
    %c0_i32_0 = arith.constant 0 : i32
    return %arg0, %c0_i32 : i32, i32
  }
}

module attributes {stable_mosaic.version = 11 : i64} {
  func.func @_conv_bias_relu_kernel(%arg0: i32, %arg1: memref<128x128xbf16, #tpu.memory_space<vmem>>, %arg2: memref<128x128xbf16, #tpu.memory_space<vmem>>, %arg3: memref<1x128xf32, #tpu.memory_space<vmem>>, %arg4: memref<128x128xbf16, #tpu.memory_space<vmem>>) attributes {dimension_semantics = [#tpu.dimension_semantics<parallel>], iteration_bounds = array<i64: 1>, scalar_prefetch = 0 : i64, scratch_operands = 0 : i64, tpu.core_type = #tpu.core_type<tc>, window_params = [{transform_indices = @transform_0, window_bounds = array<i64: 128, 128>}, {pipeline_mode = #tpu.pipeline_mode<synchronous>, transform_indices = @transform_1, window_bounds = array<i64: 128, 128>}, {pipeline_mode = #tpu.pipeline_mode<synchronous>, transform_indices = @transform_2, window_bounds = array<i64: 1, 128>}, {transform_indices = @transform_3, window_bounds = array<i64: 128, 128>}]} {
    %c0 = arith.constant 0 : index
    %c0_0 = arith.constant 0 : index
    %0 = vector.load %arg1[%c0, %c0_0] : memref<128x128xbf16, #tpu.memory_space<vmem>>, vector<128x128xbf16>
    %c0_1 = arith.constant 0 : index
    %c0_2 = arith.constant 0 : index
    %1 = vector.load %arg2[%c0_1, %c0_2] : memref<128x128xbf16, #tpu.memory_space<vmem>>, vector<128x128xbf16>
    %cst = arith.constant dense<0.000000e+00> : vector<128x128xf32>
    %2 = tpu.matmul %0, %1, %cst {dimension_numbers = #tpu.dot_dimension_numbers<[1], [0], [0], [1], [0, 0, 1, 1], [], []>} : vector<128x128xbf16>, vector<128x128xbf16>, vector<128x128xf32> -> vector<128x128xf32>
    %c0_3 = arith.constant 0 : index
    %c0_4 = arith.constant 0 : index
    %3 = vector.load %arg3[%c0_3, %c0_4] : memref<1x128xf32, #tpu.memory_space<vmem>>, vector<1x128xf32>
    %4 = vector.broadcast %3 : vector<1x128xf32> to vector<128x128xf32>
    %5 = arith.addf %2, %4 : vector<128x128xf32>
    %cst_5 = arith.constant 0.000000e+00 : f32
    %6 = vector.broadcast %cst_5 : f32 to vector<128x128xf32>
    %7 = arith.maximumf %5, %6 : vector<128x128xf32>
    %8 = arith.truncf %7 : vector<128x128xf32> to vector<128x128xbf16>
    %c0_6 = arith.constant 0 : index
    %c0_7 = arith.constant 0 : index
    %9 = vector.load %arg4[%c0_6, %c0_7] : memref<128x128xbf16, #tpu.memory_space<vmem>>, vector<128x128xbf16>
    tpu.vector_store %arg4[%c0_6, %c0_7], %8 {strides = array<i32>} : memref<128x128xbf16, #tpu.memory_space<vmem>>, vector<128x128xbf16>,
    return
  }
  func.func @transform_0(%arg0: i32) -> (i32, i32) {
    %c0_i32 = arith.constant 0 : i32
    %c0_i32_0 = arith.constant 0 : i32
    return %arg0, %c0_i32 : i32, i32
  }
  func.func @transform_1(%arg0: i32) -> (i32, i32) {
    %c0_i32 = arith.constant 0 : i32
    %c0_i32_0 = arith.constant 0 : i32
    %c0_i32_1 = arith.constant 0 : i32
    return %c0_i32, %c0_i32_0 : i32, i32
  }
  func.func @transform_2(%arg0: i32) -> (i32, i32) {
    %c0_i32 = arith.constant 0 : i32
    %c0_i32_0 = arith.constant 0 : i32
    %c0_i32_1 = arith.constant 0 : i32
    return %c0_i32, %c0_i32_0 : i32, i32
  }
  func.func @transform_3(%arg0: i32) -> (i32, i32) {
    %c0_i32 = arith.constant 0 : i32
    %c0_i32_0 = arith.constant 0 : i32
    return %arg0, %c0_i32 : i32, i32
  }
}

module attributes {stable_mosaic.version = 11 : i64} {
  func.func @_conv_bias_relu_kernel(%arg0: i32, %arg1: memref<128x256xbf16, #tpu.memory_space<vmem>>, %arg2: memref<256x128xbf16, #tpu.memory_space<vmem>>, %arg3: memref<1x128xf32, #tpu.memory_space<vmem>>, %arg4: memref<128x128xbf16, #tpu.memory_space<vmem>>) attributes {dimension_semantics = [#tpu.dimension_semantics<parallel>], iteration_bounds = array<i64: 1>, scalar_prefetch = 0 : i64, scratch_operands = 0 : i64, tpu.core_type = #tpu.core_type<tc>, window_params = [{transform_indices = @transform_0, window_bounds = array<i64: 128, 256>}, {pipeline_mode = #tpu.pipeline_mode<synchronous>, transform_indices = @transform_1, window_bounds = array<i64: 256, 128>}, {pipeline_mode = #tpu.pipeline_mode<synchronous>, transform_indices = @transform_2, window_bounds = array<i64: 1, 128>}, {transform_indices = @transform_3, window_bounds = array<i64: 128, 128>}]} {
    %c0 = arith.constant 0 : index
    %c0_0 = arith.constant 0 : index
    %0 = vector.load %arg1[%c0, %c0_0] : memref<128x256xbf16, #tpu.memory_space<vmem>>, vector<128x256xbf16>
    %c0_1 = arith.constant 0 : index
    %c0_2 = arith.constant 0 : index
    %1 = vector.load %arg2[%c0_1, %c0_2] : memref<256x128xbf16, #tpu.memory_space<vmem>>, vector<256x128xbf16>
    %cst = arith.constant dense<0.000000e+00> : vector<128x128xf32>
    %2 = tpu.matmul %0, %1, %cst {dimension_numbers = #tpu.dot_dimension_numbers<[1], [0], [0], [1], [0, 0, 1, 1], [], []>} : vector<128x256xbf16>, vector<256x128xbf16>, vector<128x128xf32> -> vector<128x128xf32>
    %c0_3 = arith.constant 0 : index
    %c0_4 = arith.constant 0 : index
    %3 = vector.load %arg3[%c0_3, %c0_4] : memref<1x128xf32, #tpu.memory_space<vmem>>, vector<1x128xf32>
    %4 = vector.broadcast %3 : vector<1x128xf32> to vector<128x128xf32>
    %5 = arith.addf %2, %4 : vector<128x128xf32>
    %cst_5 = arith.constant 0.000000e+00 : f32
    %6 = vector.broadcast %cst_5 : f32 to vector<128x128xf32>
    %7 = arith.maximumf %5, %6 : vector<128x128xf32>
    %8 = arith.truncf %7 : vector<128x128xf32> to vector<128x128xbf16>
    %c0_6 = arith.constant 0 : index
    %c0_7 = arith.constant 0 : index
    %9 = vector.load %arg4[%c0_6, %c0_7] : memref<128x128xbf16, #tpu.memory_space<vmem>>, vector<128x128xbf16>
    tpu.vector_store %arg4[%c0_6, %c0_7], %8 {strides = array<i32>} : memref<128x128xbf16, #tpu.memory_space<vmem>>, vector<128x128xbf16>,
    return
  }
  func.func @transform_0(%arg0: i32) -> (i32, i32) {
    %c0_i32 = arith.constant 0 : i32
    %c0_i32_0 = arith.constant 0 : i32
    return %arg0, %c0_i32 : i32, i32
  }
  func.func @transform_1(%arg0: i32) -> (i32, i32) {
    %c0_i32 = arith.constant 0 : i32
    %c0_i32_0 = arith.constant 0 : i32
    %c0_i32_1 = arith.constant 0 : i32
    return %c0_i32, %c0_i32_0 : i32, i32
  }
  func.func @transform_2(%arg0: i32) -> (i32, i32) {
    %c0_i32 = arith.constant 0 : i32
    %c0_i32_0 = arith.constant 0 : i32
    %c0_i32_1 = arith.constant 0 : i32
    return %c0_i32, %c0_i32_0 : i32, i32
  }
  func.func @transform_3(%arg0: i32) -> (i32, i32) {
    %c0_i32 = arith.constant 0 : i32
    %c0_i32_0 = arith.constant 0 : i32
    return %arg0, %c0_i32 : i32, i32
  }
}

module attributes {stable_mosaic.version = 11 : i64} {
  func.func @_global_avg_pool_kernel(%arg0: i32, %arg1: memref<2x16x128xbf16, #tpu.memory_space<vmem>>, %arg2: memref<2x128xf32, #tpu.memory_space<vmem>>) attributes {dimension_semantics = [#tpu.dimension_semantics<arbitrary>], iteration_bounds = array<i64: 1>, scalar_prefetch = 0 : i64, scratch_operands = 0 : i64, tpu.core_type = #tpu.core_type<tc>, window_params = [{transform_indices = @transform_0, window_bounds = array<i64: 2, 16, 128>}, {pipeline_mode = #tpu.pipeline_mode<synchronous>, transform_indices = @transform_1, window_bounds = array<i64: 2, 128>}]} {
    %c0_i32 = arith.constant 0 : i32
    %0 = arith.cmpi eq, %arg0, %c0_i32 : i32
    %1 = arith.extui %0 : i1 to i32
    %c0_i32_0 = arith.constant 0 : i32
    %2 = arith.cmpi ne, %1, %c0_i32_0 : i32
    scf.if %2 {
      %cst_9 = arith.constant 0.000000e+00 : f32
      %12 = vector.broadcast %cst_9 : f32 to vector<2x128xf32>
      %c0_10 = arith.constant 0 : index
      %c0_11 = arith.constant 0 : index
      %13 = vector.load %arg2[%c0_10, %c0_11] : memref<2x128xf32, #tpu.memory_space<vmem>>, vector<2x128xf32>
      tpu.vector_store %arg2[%c0_10, %c0_11], %12 {strides = array<i32>} : memref<2x128xf32, #tpu.memory_space<vmem>>, vector<2x128xf32>,
    } else {
    }
    %c0 = arith.constant 0 : index
    %c0_1 = arith.constant 0 : index
    %3 = vector.load %arg2[%c0, %c0_1] : memref<2x128xf32, #tpu.memory_space<vmem>>, vector<2x128xf32>
    %c0_2 = arith.constant 0 : index
    %c0_3 = arith.constant 0 : index
    %c0_4 = arith.constant 0 : index
    %4 = vector.load %arg1[%c0_2, %c0_3, %c0_4] : memref<2x16x128xbf16, #tpu.memory_space<vmem>>, vector<2x16x128xbf16>
    %5 = arith.extf %4 : vector<2x16x128xbf16> to vector<2x16x128xf32>
    %cst = arith.constant dense<0.000000e+00> : vector<2x128xf32>
    %6 = vector.multi_reduction <add>, %5, %cst [1] : vector<2x16x128xf32> to vector<2x128xf32>
    %7 = arith.addf %3, %6 : vector<2x128xf32>
    %c0_5 = arith.constant 0 : index
    %c0_6 = arith.constant 0 : index
    %8 = vector.load %arg2[%c0_5, %c0_6] : memref<2x128xf32, #tpu.memory_space<vmem>>, vector<2x128xf32>
    tpu.vector_store %arg2[%c0_5, %c0_6], %7 {strides = array<i32>} : memref<2x128xf32, #tpu.memory_space<vmem>>, vector<2x128xf32>,
    %c0_i32_7 = arith.constant 0 : i32
    %9 = arith.cmpi eq, %arg0, %c0_i32_7 : i32
    %10 = arith.extui %9 : i1 to i32
    %c0_i32_8 = arith.constant 0 : i32
    %11 = arith.cmpi ne, %10, %c0_i32_8 : i32
    scf.if %11 {
      %c0_9 = arith.constant 0 : index
      %c0_10 = arith.constant 0 : index
      %12 = vector.load %arg2[%c0_9, %c0_10] : memref<2x128xf32, #tpu.memory_space<vmem>>, vector<2x128xf32>
      %cst_11 = arith.constant 6.250000e-02 : f32
      %13 = vector.broadcast %cst_11 : f32 to vector<2x128xf32>
      %14 = arith.mulf %12, %13 : vector<2x128xf32>
      %c0_12 = arith.constant 0 : index
      %c0_13 = arith.constant 0 : index
      %15 = vector.load %arg2[%c0_12, %c0_13] : memref<2x128xf32, #tpu.memory_space<vmem>>, vector<2x128xf32>
      tpu.vector_store %arg2[%c0_12, %c0_13], %14 {strides = array<i32>} : memref<2x128xf32, #tpu.memory_space<vmem>>, vector<2x128xf32>,
    } else {
    }
    return
  }
  func.func @transform_0(%arg0: i32) -> (i32, i32, i32) {
    %c0_i32 = arith.constant 0 : i32
    %c0_i32_0 = arith.constant 0 : i32
    %c0_i32_1 = arith.constant 0 : i32
    return %c0_i32, %arg0, %c0_i32_0 : i32, i32, i32
  }
  func.func @transform_1(%arg0: i32) -> (i32, i32) {
    %c0_i32 = arith.constant 0 : i32
    %c0_i32_0 = arith.constant 0 : i32
    %c0_i32_1 = arith.constant 0 : i32
    return %c0_i32, %c0_i32_0 : i32, i32
  }
}

</mosaic_0001>

<llo_original>
// kernel: image_encoder_forward_nchw.4
$region0: #{image_encoder_forward_nchw.4}
  #allocation0 [shape = 'u32[]', space=smem, size = 0x4, offset = 0x4, fixed_abs, tag = 'smem constant byte address 0x4 - core index']
  #allocation1 [shape = 'u32[144,128]{1,0:T(1,128)}', space=vmem, size = 0x12000, scoped, tag = 'internal scratch']
  %s0 = inlined_call_operand.vmem [shape: bf16[512,128], index: 0, kind: input, shape index: {}]
  %s1 = inlined_call_operand.vmem [shape: bf16[128,128], index: 1, kind: input, shape index: {}]
  %s2 = inlined_call_operand.vmem [shape: f32[1,128], index: 2, kind: input, shape index: {}]
  %s3 = inlined_call_operand.vmem [shape: bf16[512,128], index: 3, kind: output, shape index: {}]
  %s4 = sld [smem:[#allocation0]]
  $region45: #{image_encoder_forward_nchw.4} parent=0
    _
  %s6 = ssub.s32 1, %s4
  %s7 = scalar_select 0, %s6, %s4
  loop: start=0, step=1, limit=4
  $region2: #{image_encoder_forward_nchw.4} parent=0 // loop_pre_header
    _
  $region3: #{image_encoder_forward_nchw.4} parent=0 // loop_header
    %s9 = sphi 0, %s13
    %p10 = scmp.ge.s32.totalorder %s9, 4
    %s19 = sphi 0, %s21
    %s22 = sphi 0, %s19
    %s23 = sphi 0, %s22
    %s39 = sphi 0, %s23
    %s43 = sphi 0, %s43
    %s45 = sphi 0, %s43
    %s46 = sphi 0, %s45
    %s60 = sphi 0, %s46
    %s64 = sphi 0, %s64
    %s66 = sphi 0, %s64
    %s67 = sphi 0, %s66
    %s81 = sphi 0, %s67
    %s87 = sphi 0, %s89
    %s90 = sphi 0, %s87
    %s91 = sphi 0, %s90
    %s107 = sphi 0, %s91
  $region4: #{image_encoder_forward_nchw.4} parent=0 // loop_header_branch
    %12 = sbr.rel (%p10) target = $region8
  $region5: #{image_encoder_forward_nchw.4} parent=0 // loop_body
    %s14 = ssub.s32 %s9, 1
    %s15 = ssub.s32 %s9, 2
    %s16 = sadd.s32 %s9, 1
    %s17 = ssub.s32 %s9, %s16
    %p18 = scmp.eq.s32.totalorder %s17, 0
    %s20 = sadd.s32 %s19, 1
    %s21 = scalar_select %p18, %s19, %s20
    %p24 = pneg %p18
    %p25 = scmp.eq.s32.totalorder %s9, 1
    %p26 = por %p24, %p25
    %p27 = scmp.ne.s32.totalorder %s19, %s22
    %p28 = scmp.eq.s32.totalorder %s9, 0
    %p29 = por %p27, %p28
    %p30 = scmp.ne.s32.totalorder %s19, %s22
    %p31 = scmp.eq.s32.totalorder %s14, 1
    %p32 = por %p30, %p31
    %p33 = scmp.ne.s32.totalorder %s22, %s23
    %p34 = scmp.eq.s32.totalorder %s14, 0
    %p35 = por %p33, %p34
    %p36 = scmp.ne.s32.totalorder %s22, %s23
    %p37 = scmp.eq.s32.totalorder %s15, 1
    %p38 = por %p36, %p37
    %p40 = scmp.ne.s32.totalorder %s23, %s39
    %p41 = scmp.eq.s32.totalorder %s15, 0
    %p42 = por %p40, %p41
    %s44 = sadd.s32 %s43, 1
    %p47 = scmp.eq.s32.totalorder %s9, 1
    %p48 = scmp.ne.s32.totalorder %s43, %s45
    %p49 = scmp.eq.s32.totalorder %s9, 0
    %p50 = por %p48, %p49
    %p51 = scmp.ne.s32.totalorder %s43, %s45
    %p52 = scmp.eq.s32.totalorder %s14, 1
    %p53 = por %p51, %p52
    %p54 = scmp.ne.s32.totalorder %s45, %s46
    %p55 = scmp.eq.s32.totalorder %s14, 0
    %p56 = por %p54, %p55
    %p57 = scmp.ne.s32.totalorder %s45, %s46
    %p58 = scmp.eq.s32.totalorder %s15, 1
    %p59 = por %p57, %p58
    %p61 = scmp.ne.s32.totalorder %s46, %s60
    %p62 = scmp.eq.s32.totalorder %s15, 0
    %p63 = por %p61, %p62
    %s65 = sadd.s32 %s64, 1
    %p68 = scmp.eq.s32.totalorder %s9, 1
    %p69 = scmp.ne.s32.totalorder %s64, %s66
    %p70 = scmp.eq.s32.totalorder %s9, 0
    %p71 = por %p69, %p70
    %p72 = scmp.ne.s32.totalorder %s64, %s66
    %p73 = scmp.eq.s32.totalorder %s14, 1
    %p74 = por %p72, %p73
    %p75 = scmp.ne.s32.totalorder %s66, %s67
    %p76 = scmp.eq.s32.totalorder %s14, 0
    %p77 = por %p75, %p76
    %p78 = scmp.ne.s32.totalorder %s66, %s67
    %p79 = scmp.eq.s32.totalorder %s15, 1
    %p80 = por %p78, %p79
    %p82 = scmp.ne.s32.totalorder %s67, %s81
    %p83 = scmp.eq.s32.totalorder %s15, 0
    %p84 = por %p82, %p83
    %s85 = ssub.s32 %s9, %s16
    %p86 = scmp.eq.s32.totalorder %s85, 0
    %s88 = sadd.s32 %s87, 1
    %s89 = scalar_select %p86, %s87, %s88
    %p92 = pneg %p86
    %p93 = scmp.eq.s32.totalorder %s9, 1
    %p94 = por %p92, %p93
    %p95 = scmp.ne.s32.totalorder %s87, %s90
    %p96 = scmp.eq.s32.totalorder %s9, 0
    %p97 = por %p95, %p96
    %p98 = scmp.ne.s32.totalorder %s87, %s90
    %p99 = scmp.eq.s32.totalorder %s14, 1
    %p100 = por %p98, %p99
    %p101 = scmp.ne.s32.totalorder %s90, %s91
    %p102 = scmp.eq.s32.totalorder %s14, 0
    %p103 = por %p101, %p102
    %p104 = scmp.ne.s32.totalorder %s90, %s91
    %p105 = scmp.eq.s32.totalorder %s15, 1
    %p106 = por %p104, %p105
    %p108 = scmp.ne.s32.totalorder %s91, %s107
    %p109 = scmp.eq.s32.totalorder %s15, 0
    %p110 = por %p108, %p109
    %p111 = scmp.le.s32.totalorder 1, %s9
    %p112 = scmp.lt.s32.totalorder %s9, 3
    %p113 = pnand %p111, %p112
    %p114 = pneg %p113
    // Predicated region
    $region9: #{image_encoder_forward_nchw.4} parent=5 // pred_check
      _
    $region10: #{image_encoder_forward_nchw.4} parent=5 // pred_check_branch
      %116 = sbr.rel (%p113) target = $region12
    $region11: #{image_encoder_forward_nchw.4} parent=5 // pred_region
      %s117 = ssub.s32 %s9, 1
      // Predicated region
      $region13: #{image_encoder_forward_nchw.4} parent=11 // pred_check
        %p118 = pneg %p56
      $region14: #{image_encoder_forward_nchw.4} parent=11 // pred_check_branch
        %120 = sbr.rel (%p118) target = $region16
      $region15: #{image_encoder_forward_nchw.4} parent=11 // pred_region
        _
      $region16: #{image_encoder_forward_nchw.4} parent=11 // pred_fallthru
        _
      // Predicated region
      $region17: #{image_encoder_forward_nchw.4} parent=11 // pred_check
        %p121 = pneg %p77
      $region18: #{image_encoder_forward_nchw.4} parent=11 // pred_check_branch
        %123 = sbr.rel (%p121) target = $region20
      $region19: #{image_encoder_forward_nchw.4} parent=11 // pred_region
        _
      $region20: #{image_encoder_forward_nchw.4} parent=11 // pred_fallthru
        _
    $region12: #{image_encoder_forward_nchw.4} parent=5 // pred_fallthru
      _
    %p124 = scmp.lt.s32.totalorder %s9, 2
    // Predicated region
    $region21: #{image_encoder_forward_nchw.4} parent=5 // pred_check
      %p125 = pneg %p124
    $region22: #{image_encoder_forward_nchw.4} parent=5 // pred_check_branch
      %127 = sbr.rel (%p125) target = $region24
    $region23: #{image_encoder_forward_nchw.4} parent=5 // pred_region
      // Predicated region
      $region25: #{image_encoder_forward_nchw.4} parent=23 // pred_check
        %p128 = pneg %p29
      $region26: #{image_encoder_forward_nchw.4} parent=23 // pred_check_branch
        %130 = sbr.rel (%p128) target = $region28
      $region27: #{image_encoder_forward_nchw.4} parent=23 // pred_region
        %s131 = smul.u32 32, %s9
        %p132 = scmp.lt.s32.totalorder %s131, 63
        %s133 = scalar_select %p132, %s131, 63
        %s134 = smul.addr %s133, 4
        %s135 = scalar_lea.vmem %s0, %s134
        %s136 = smul.u32 32, %s9
      $region28: #{image_encoder_forward_nchw.4} parent=23 // pred_fallthru
        _
    $region24: #{image_encoder_forward_nchw.4} parent=5 // pred_fallthru
      _
    %p137 = scmp.le.s32.totalorder 1, %s9
    %p138 = scmp.lt.s32.totalorder %s9, 3
    %p139 = pnand %p137, %p138
    %p140 = pneg %p139
    // Predicated region
    $region29: #{image_encoder_forward_nchw.4} parent=5 // pred_check
      _
    $region30: #{image_encoder_forward_nchw.4} parent=5 // pred_check_branch
      %142 = sbr.rel (%p139) target = $region32
    $region31: #{image_encoder_forward_nchw.4} parent=5 // pred_region
      %s143 = ssub.s32 %s9, 1
      %s144 = smul.u32 32, %s14
      %p145 = scmp.lt.s32.totalorder %s144, 63
      %s146 = scalar_select %p145, %s144, 63
      %s147 = smul.addr %s146, 4
      %s148 = scalar_lea.vmem %s0, %s147
      %p149 = pneg %p35
      %p150 = pneg %p32
      %p151 = pneg %p56
      %p152 = pneg %p53
      %p153 = pneg %p77
      %p154 = pneg %p74
      %p155 = pneg %p103
      %p156 = pneg %p100
      %s157 = smul.u32 32, %s14
      %p158 = scmp.lt.s32.totalorder %s157, 63
      %s159 = scalar_select %p158, %s157, 63
      %s160 = smul.addr %s159, 4
      %s161 = scalar_lea.vmem %s3, %s160
      %s162 = smul.u32 32, %s14
      %p163 = scmp.lt.s32.totalorder %s162, 63
      %s164 = scalar_select %p163, %s162, 63
      %s165 = smul.addr %s164, 4
      %s166 = scalar_lea.vmem %s0, %s165
      %s167 = smul.u32 32, %s14
      %s168 = smul.u32 32, %s14
      %p169 = scmp.lt.s32.totalorder %s168, 63
      %s170 = scalar_select %p169, %s168, 63
      %s171 = smul.addr %s170, 4
      %s172 = scalar_lea.vmem %s3, %s171
      %s173 = smul.u32 32, %s14
      %v175 = vld [vmem:[%s166] sm:$0xf]
      %v176 = vld [vmem:[%s166 + $0x4] sm:$0xf]
      %v177 = vld [vmem:[%s166 + $0x8] sm:$0xf]
      %v178 = vld [vmem:[%s166 + $0xc] sm:$0xf]
      %v179 = vld [vmem:[%s166 + $0x10] sm:$0xf]
      %v180 = vld [vmem:[%s166 + $0x14] sm:$0xf]
      %v181 = vld [vmem:[%s166 + $0x18] sm:$0xf]
      %v182 = vld [vmem:[%s166 + $0x1c] sm:$0xf]
      %v183 = vld [vmem:[%s166 + $0x20] sm:$0xf]
      %v184 = vld [vmem:[%s166 + $0x24] sm:$0xf]
      %v185 = vld [vmem:[%s166 + $0x28] sm:$0xf]
      %v186 = vld [vmem:[%s166 + $0x2c] sm:$0xf]
      %v187 = vld [vmem:[%s166 + $0x30] sm:$0xf]
      %v188 = vld [vmem:[%s166 + $0x34] sm:$0xf]
      %v189 = vld [vmem:[%s166 + $0x38] sm:$0xf]
      %v190 = vld [vmem:[%s166 + $0x3c] sm:$0xf]
      %v191 = vld [vmem:[%s166 + $0x40] sm:$0xf]
      %v192 = vld [vmem:[%s166 + $0x44] sm:$0xf]
      %v193 = vld [vmem:[%s166 + $0x48] sm:$0xf]
      %v194 = vld [vmem:[%s166 + $0x4c] sm:$0xf]
      %v195 = vld [vmem:[%s166 + $0x50] sm:$0xf]
      %v196 = vld [vmem:[%s166 + $0x54] sm:$0xf]
      %v197 = vld [vmem:[%s166 + $0x58] sm:$0xf]
      %v198 = vld [vmem:[%s166 + $0x5c] sm:$0xf]
      %v199 = vld [vmem:[%s166 + $0x60] sm:$0xf]
      %v200 = vld [vmem:[%s166 + $0x64] sm:$0xf]
      %v201 = vld [vmem:[%s166 + $0x68] sm:$0xf]
      %v202 = vld [vmem:[%s166 + $0x6c] sm:$0xf]
      %v203 = vld [vmem:[%s166 + $0x70] sm:$0xf]
      %v204 = vld [vmem:[%s166 + $0x74] sm:$0xf]
      %v205 = vld [vmem:[%s166 + $0x78] sm:$0xf]
      %v206 = vld [vmem:[%s166 + $0x7c] sm:$0xf]
      %v207 = vld [vmem:[%s1] sm:$0xf]
      %v208 = vld [vmem:[%s1 + $0x4] sm:$0xf]
      %v209 = vld [vmem:[%s1 + $0x8] sm:$0xf]
      %v210 = vld [vmem:[%s1 + $0xc] sm:$0xf]
      %v211 = vld [vmem:[%s1 + $0x10] sm:$0xf]
      %v212 = vld [vmem:[%s1 + $0x14] sm:$0xf]
      %v213 = vld [vmem:[%s1 + $0x18] sm:$0xf]
      %v214 = vld [vmem:[%s1 + $0x1c] sm:$0xf]
      %v215 = vld [vmem:[%s1 + $0x20] sm:$0xf]
      %v216 = vld [vmem:[%s1 + $0x24] sm:$0xf]
      %v217 = vld [vmem:[%s1 + $0x28] sm:$0xf]
      %v218 = vld [vmem:[%s1 + $0x2c] sm:$0xf]
      %v219 = vld [vmem:[%s1 + $0x30] sm:$0xf]
      %v220 = vld [vmem:[%s1 + $0x34] sm:$0xf]
      %v221 = vld [vmem:[%s1 + $0x38] sm:$0xf]
      %v222 = vld [vmem:[%s1 + $0x3c] sm:$0xf]
      %v223 = vld [vmem:[%s2] sm:$0x1]
      %v225 = vlaneseq
      %v226 = vshrl.u32 %v225, 7
      %v227 = vsub.s32 0, %v226
      %v228 = vrot.slane %v223, %v227
      %v262 = vunpack.c.l.b16 %v175
      %v263 = vunpack.c.l.b16 %v176
      %v264 = vunpack.c.l.b16 %v177
      %v265 = vunpack.c.l.b16 %v178
      %v266 = vunpack.c.l.b16 %v179
      %v267 = vunpack.c.l.b16 %v180
      %v268 = vunpack.c.l.b16 %v181
      %v269 = vunpack.c.l.b16 %v182
      %v270 = vunpack.c.l.b16 %v183
      %v271 = vunpack.c.l.b16 %v184
      %v272 = vunpack.c.l.b16 %v185
      %v273 = vunpack.c.l.b16 %v186
      %v274 = vunpack.c.l.b16 %v187
      %v275 = vunpack.c.l.b16 %v188
      %v276 = vunpack.c.l.b16 %v189
      %v277 = vunpack.c.l.b16 %v190
      %v278 = vunpack.c.l.b16 %v191
      %v279 = vunpack.c.l.b16 %v192
      %v280 = vunpack.c.l.b16 %v193
      %v281 = vunpack.c.l.b16 %v194
      %v282 = vunpack.c.l.b16 %v195
      %v283 = vunpack.c.l.b16 %v196
      %v284 = vunpack.c.l.b16 %v197
      %v285 = vunpack.c.l.b16 %v198
      %v286 = vunpack.c.l.b16 %v199
      %v287 = vunpack.c.l.b16 %v200
      %v288 = vunpack.c.l.b16 %v201
      %v289 = vunpack.c.l.b16 %v202
      %v290 = vunpack.c.l.b16 %v203
      %v291 = vunpack.c.l.b16 %v204
      %v292 = vunpack.c.l.b16 %v205
      %v293 = vunpack.c.l.b16 %v206
      %v294 = vpack.c.b16 %v263, %v262
      %v295 = vpack.c.b16 %v265, %v264
      %v296 = vpack.c.b16 %v267, %v266
      %v297 = vpack.c.b16 %v269, %v268
      %v298 = vpack.c.b16 %v271, %v270
      %v299 = vpack.c.b16 %v273, %v272
      %v300 = vpack.c.b16 %v275, %v274
      %v301 = vpack.c.b16 %v277, %v276
      %v302 = vpack.c.b16 %v279, %v278
      %v303 = vpack.c.b16 %v281, %v280
      %v304 = vpack.c.b16 %v283, %v282
      %v305 = vpack.c.b16 %v285, %v284
      %v306 = vpack.c.b16 %v287, %v286
      %v307 = vpack.c.b16 %v289, %v288
      %v308 = vpack.c.b16 %v291, %v290
      %v309 = vpack.c.b16 %v293, %v292
      %v342 = vunpack.c.l.b16 %v207
      %v343 = vunpack.c.l.b16 %v208
      %v344 = vunpack.c.l.b16 %v209
      %v345 = vunpack.c.l.b16 %v210
      %v346 = vunpack.c.l.b16 %v211
      %v347 = vunpack.c.l.b16 %v212
      %v348 = vunpack.c.l.b16 %v213
      %v349 = vunpack.c.l.b16 %v214
      %v350 = vunpack.c.l.b16 %v215
      %v351 = vunpack.c.l.b16 %v216
      %v352 = vunpack.c.l.b16 %v217
      %v353 = vunpack.c.l.b16 %v218
      %v354 = vunpack.c.l.b16 %v219
      %v355 = vunpack.c.l.b16 %v220
      %v356 = vunpack.c.l.b16 %v221
      %v357 = vunpack.c.l.b16 %v222
      %v358 = vpack.c.b16 %v343, %v342
      %v359 = vpack.c.b16 %v345, %v344
      %v360 = vpack.c.b16 %v347, %v346
      %v361 = vpack.c.b16 %v349, %v348
      %v362 = vpack.c.b16 %v351, %v350
      %v363 = vpack.c.b16 %v353, %v352
      %v364 = vpack.c.b16 %v355, %v354
      %v365 = vpack.c.b16 %v357, %v356
      %374 = vmatprep.subr.bf16.mxu0 0
      %375 = vmatpush1.bf16.msra.mxu0 %v365
      %376 = vmatprep.subr.bf16.mxu0 0
      %377 = vmatpush1.bf16.msra.mxu0 %v364
      %378 = vmatprep.subr.bf16.mxu0 0
      %379 = vmatpush1.bf16.msra.mxu0 %v363
      %380 = vmatprep.subr.bf16.mxu0 0
      %381 = vmatpush1.bf16.msra.mxu0 %v362
      %382 = vmatprep.subr.bf16.mxu0 0
      %383 = vmatpush1.bf16.msra.mxu0 %v361
      %384 = vmatprep.subr.bf16.mxu0 0
      %385 = vmatpush1.bf16.msra.mxu0 %v360
      %386 = vmatprep.subr.bf16.mxu0 0
      %387 = vmatpush1.bf16.msra.mxu0 %v359
      %388 = vmatprep.subr.bf16.mxu0 0
      %389 = vmatpush1.bf16.msra.mxu0 %v358
      %390 = vmatprep.subr.bf16.mxu0 0
      %391 = vmatpush2.bf16.msra.mxu0 0
      %392 = vmatprep.subr.bf16.mxu0 0
      %393 = vmatpush2.bf16.msra.mxu0 0
      %394 = vmatprep.subr.bf16.mxu0 0
      %395 = vmatpush2.bf16.msra.mxu0 0
      %396 = vmatprep.subr.bf16.mxu0 0
      %397 = vmatpush2.bf16.msra.mxu0 0
      %398 = vmatprep.subr.bf16.mxu0 0
      %399 = vmatpush2.bf16.msra.mxu0 0
      %400 = vmatprep.subr.bf16.mxu0 0
      %401 = vmatpush2.bf16.msra.mxu0 0
      %402 = vmatprep.subr.bf16.mxu0 0
      %403 = vmatpush2.bf16.msra.mxu0 0
      %404 = vmatprep.subr.bf16.mxu0 0
      %405 = vmatpush2.bf16.msra.mxu0 0
      %406 = vmatprep.mubr.bf16.mxu0 0
      %407 = vmatmul.mubr.bf16.gmra.mxu0 %v294
      %v408 = vpop.f32.mrf.mxu0
      %v409 = vadd.f32 %v228, %v408
      %v410 = vpop.f32.mrf.mxu0
      %v411 = vpop.f32.mrf.mxu0
      %v412 = vadd.f32 %v228, %v411
      %v413 = vpop.f32.mrf.mxu0
      %414 = vmatprep.mubr.bf16.mxu0 0
      %415 = vmatmul.mubr.bf16.gmra.mxu0 %v295
      %v416 = vpop.f32.mrf.mxu0
      %v417 = vadd.f32 %v228, %v416
      %v418 = vpop.f32.mrf.mxu0
      %v419 = vpop.f32.mrf.mxu0
      %v420 = vadd.f32 %v228, %v419
      %v421 = vpop.f32.mrf.mxu0
      %422 = vmatprep.mubr.bf16.mxu0 0
      %423 = vmatmul.mubr.bf16.gmra.mxu0 %v296
      %v424 = vpop.f32.mrf.mxu0
      %v425 = vadd.f32 %v228, %v424
      %v426 = vpop.f32.mrf.mxu0
      %v427 = vpop.f32.mrf.mxu0
      %v428 = vadd.f32 %v228, %v427
      %v429 = vpop.f32.mrf.mxu0
      %430 = vmatprep.mubr.bf16.mxu0 0
      %431 = vmatmul.mubr.bf16.gmra.mxu0 %v297
      %v432 = vpop.f32.mrf.mxu0
      %v433 = vadd.f32 %v228, %v432
      %v434 = vpop.f32.mrf.mxu0
      %v435 = vpop.f32.mrf.mxu0
      %v436 = vadd.f32 %v228, %v435
      %v437 = vpop.f32.mrf.mxu0
      %438 = vmatprep.mubr.bf16.mxu0 0
      %439 = vmatmul.mubr.bf16.gmra.mxu0 %v298
      %v440 = vpop.f32.mrf.mxu0
      %v441 = vadd.f32 %v228, %v440
      %v442 = vpop.f32.mrf.mxu0
      %v443 = vpop.f32.mrf.mxu0
      %v444 = vadd.f32 %v228, %v443
      %v445 = vpop.f32.mrf.mxu0
      %446 = vmatprep.mubr.bf16.mxu0 0
      %447 = vmatmul.mubr.bf16.gmra.mxu0 %v299
      %v448 = vpop.f32.mrf.mxu0
      %v449 = vadd.f32 %v228, %v448
      %v450 = vpop.f32.mrf.mxu0
      %v451 = vpop.f32.mrf.mxu0
      %v452 = vadd.f32 %v228, %v451
      %v453 = vpop.f32.mrf.mxu0
      %454 = vmatprep.mubr.bf16.mxu0 0
      %455 = vmatmul.mubr.bf16.gmra.mxu0 %v300
      %v456 = vpop.f32.mrf.mxu0
      %v457 = vadd.f32 %v228, %v456
      %v458 = vpop.f32.mrf.mxu0
      %v459 = vpop.f32.mrf.mxu0
      %v460 = vadd.f32 %v228, %v459
      %v461 = vpop.f32.mrf.mxu0
      %462 = vmatprep.mubr.bf16.mxu0 0
      %463 = vmatmul.mubr.bf16.gmra.mxu0 %v301
      %v464 = vpop.f32.mrf.mxu0
      %v465 = vadd.f32 %v228, %v464
      %v466 = vpop.f32.mrf.mxu0
      %v467 = vpop.f32.mrf.mxu0
      %v468 = vadd.f32 %v228, %v467
      %v469 = vpop.f32.mrf.mxu0
      %470 = vmatprep.mubr.bf16.mxu0 0
      %471 = vmatmul.mubr.bf16.gmra.mxu0 %v302
      %v472 = vpop.f32.mrf.mxu0
      %v473 = vadd.f32 %v228, %v472
      %v474 = vpop.f32.mrf.mxu0
      %v475 = vpop.f32.mrf.mxu0
      %v476 = vadd.f32 %v228, %v475
      %v477 = vpop.f32.mrf.mxu0
      %478 = vmatprep.mubr.bf16.mxu0 0
      %479 = vmatmul.mubr.bf16.gmra.mxu0 %v303
      %v480 = vpop.f32.mrf.mxu0
      %v481 = vadd.f32 %v228, %v480
      %v482 = vpop.f32.mrf.mxu0
      %v483 = vpop.f32.mrf.mxu0
      %v484 = vadd.f32 %v228, %v483
      %v485 = vpop.f32.mrf.mxu0
      %486 = vmatprep.mubr.bf16.mxu0 0
      %487 = vmatmul.mubr.bf16.gmra.mxu0 %v304
      %v488 = vpop.f32.mrf.mxu0
      %v489 = vadd.f32 %v228, %v488
      %v490 = vpop.f32.mrf.mxu0
      %v491 = vpop.f32.mrf.mxu0
      %v492 = vadd.f32 %v228, %v491
      %v493 = vpop.f32.mrf.mxu0
      %494 = vmatprep.mubr.bf16.mxu0 0
      %495 = vmatmul.mubr.bf16.gmra.mxu0 %v305
      %v496 = vpop.f32.mrf.mxu0
      %v497 = vadd.f32 %v228, %v496
      %v498 = vpop.f32.mrf.mxu0
      %v499 = vpop.f32.mrf.mxu0
      %v500 = vadd.f32 %v228, %v499
      %v501 = vpop.f32.mrf.mxu0
      %502 = vmatprep.mubr.bf16.mxu0 0
      %503 = vmatmul.mubr.bf16.gmra.mxu0 %v306
      %v504 = vpop.f32.mrf.mxu0
      %v505 = vadd.f32 %v228, %v504
      %v506 = vpop.f32.mrf.mxu0
      %v507 = vpop.f32.mrf.mxu0
      %v508 = vadd.f32 %v228, %v507
      %v509 = vpop.f32.mrf.mxu0
      %510 = vmatprep.mubr.bf16.mxu0 0
      %511 = vmatmul.mubr.bf16.gmra.mxu0 %v307
      %v512 = vpop.f32.mrf.mxu0
      %v513 = vadd.f32 %v228, %v512
      %v514 = vpop.f32.mrf.mxu0
      %v515 = vpop.f32.mrf.mxu0
      %v516 = vadd.f32 %v228, %v515
      %v517 = vpop.f32.mrf.mxu0
      %518 = vmatprep.mubr.bf16.mxu0 0
      %519 = vmatmul.mubr.bf16.gmra.mxu0 %v308
      %v520 = vpop.f32.mrf.mxu0
      %v521 = vadd.f32 %v228, %v520
      %v522 = vpop.f32.mrf.mxu0
      %v523 = vpop.f32.mrf.mxu0
      %v524 = vadd.f32 %v228, %v523
      %v525 = vpop.f32.mrf.mxu0
      %526 = vmatprep.mubr.bf16.mxu0 0
      %527 = vmatmul.mubr.bf16.gmra.mxu0 %v309
      %v528 = vpop.f32.mrf.mxu0
      %v529 = vadd.f32 %v228, %v528
      %v530 = vpop.f32.mrf.mxu0
      %v531 = vpop.f32.mrf.mxu0
      %v532 = vadd.f32 %v228, %v531
      %v533 = vpop.f32.mrf.mxu0
      %534 = vdwg.mxu0
      %v535 = vmax.f32 %v409, 0.0
      %v536 = vmax.f32 %v412, 0.0
      %v537 = vmax.f32 %v417, 0.0
      %v538 = vmax.f32 %v420, 0.0
      %v539 = vmax.f32 %v425, 0.0
      %v540 = vmax.f32 %v428, 0.0
      %v541 = vmax.f32 %v433, 0.0
      %v542 = vmax.f32 %v436, 0.0
      %v543 = vmax.f32 %v441, 0.0
      %v544 = vmax.f32 %v444, 0.0
      %v545 = vmax.f32 %v449, 0.0
      %v546 = vmax.f32 %v452, 0.0
      %v547 = vmax.f32 %v457, 0.0
      %v548 = vmax.f32 %v460, 0.0
      %v549 = vmax.f32 %v465, 0.0
      %v550 = vmax.f32 %v468, 0.0
      %v551 = vmax.f32 %v473, 0.0
      %v552 = vmax.f32 %v476, 0.0
      %v553 = vmax.f32 %v481, 0.0
      %v554 = vmax.f32 %v484, 0.0
      %v555 = vmax.f32 %v489, 0.0
      %v556 = vmax.f32 %v492, 0.0
      %v557 = vmax.f32 %v497, 0.0
      %v558 = vmax.f32 %v500, 0.0
      %v559 = vmax.f32 %v505, 0.0
      %v560 = vmax.f32 %v508, 0.0
      %v561 = vmax.f32 %v513, 0.0
      %v562 = vmax.f32 %v516, 0.0
      %v563 = vmax.f32 %v521, 0.0
      %v564 = vmax.f32 %v524, 0.0
      %v565 = vmax.f32 %v529, 0.0
      %v566 = vmax.f32 %v532, 0.0
      %v567 = vpack.c.bf16 %v536, %v535
      %v568 = vpack.c.bf16 %v538, %v537
      %v569 = vpack.c.bf16 %v540, %v539
      %v570 = vpack.c.bf16 %v542, %v541
      %v571 = vpack.c.bf16 %v544, %v543
      %v572 = vpack.c.bf16 %v546, %v545
      %v573 = vpack.c.bf16 %v548, %v547
      %v574 = vpack.c.bf16 %v550, %v549
      %v575 = vpack.c.bf16 %v552, %v551
      %v576 = vpack.c.bf16 %v554, %v553
      %v577 = vpack.c.bf16 %v556, %v555
      %v578 = vpack.c.bf16 %v558, %v557
      %v579 = vpack.c.bf16 %v560, %v559
      %v580 = vpack.c.bf16 %v562, %v561
      %v581 = vpack.c.bf16 %v564, %v563
      %v582 = vpack.c.bf16 %v566, %v565
      %v599 = vunpack.c.l.b16 %v567
      %v600 = vunpack.c.h.b16 %v567
      %v601 = vunpack.c.l.b16 %v568
      %v602 = vunpack.c.h.b16 %v568
      %v603 = vunpack.c.l.b16 %v569
      %v604 = vunpack.c.h.b16 %v569
      %v605 = vunpack.c.l.b16 %v570
      %v606 = vunpack.c.h.b16 %v570
      %v607 = vunpack.c.l.b16 %v571
      %v608 = vunpack.c.h.b16 %v571
      %v609 = vunpack.c.l.b16 %v572
      %v610 = vunpack.c.h.b16 %v572
      %v611 = vunpack.c.l.b16 %v573
      %v612 = vunpack.c.h.b16 %v573
      %v613 = vunpack.c.l.b16 %v574
      %v614 = vunpack.c.h.b16 %v574
      %v615 = vunpack.c.l.b16 %v575
      %v616 = vunpack.c.h.b16 %v575
      %v617 = vunpack.c.l.b16 %v576
      %v618 = vunpack.c.h.b16 %v576
      %v619 = vunpack.c.l.b16 %v577
      %v620 = vunpack.c.h.b16 %v577
      %v621 = vunpack.c.l.b16 %v578
      %v622 = vunpack.c.h.b16 %v578
      %v623 = vunpack.c.l.b16 %v579
      %v624 = vunpack.c.h.b16 %v579
      %v625 = vunpack.c.l.b16 %v580
      %v626 = vunpack.c.h.b16 %v580
      %v627 = vunpack.c.l.b16 %v581
      %v628 = vunpack.c.h.b16 %v581
      %v629 = vunpack.c.l.b16 %v582
      %v630 = vunpack.c.h.b16 %v582
      %v631 = vpack.c.b16 %v599, %v599
      %v632 = vpack.c.b16 %v600, %v600
      %v633 = vpack.c.b16 %v601, %v601
      %v634 = vpack.c.b16 %v602, %v602
      %v635 = vpack.c.b16 %v603, %v603
      %v636 = vpack.c.b16 %v604, %v604
      %v637 = vpack.c.b16 %v605, %v605
      %v638 = vpack.c.b16 %v606, %v606
      %v639 = vpack.c.b16 %v607, %v607
      %v640 = vpack.c.b16 %v608, %v608
      %v641 = vpack.c.b16 %v609, %v609
      %v642 = vpack.c.b16 %v610, %v610
      %v643 = vpack.c.b16 %v611, %v611
      %v644 = vpack.c.b16 %v612, %v612
      %v645 = vpack.c.b16 %v613, %v613
      %v646 = vpack.c.b16 %v614, %v614
      %v647 = vpack.c.b16 %v615, %v615
      %v648 = vpack.c.b16 %v616, %v616
      %v649 = vpack.c.b16 %v617, %v617
      %v650 = vpack.c.b16 %v618, %v618
      %v651 = vpack.c.b16 %v619, %v619
      %v652 = vpack.c.b16 %v620, %v620
      %v653 = vpack.c.b16 %v621, %v621
      %v654 = vpack.c.b16 %v622, %v622
      %v655 = vpack.c.b16 %v623, %v623
      %v656 = vpack.c.b16 %v624, %v624
      %v657 = vpack.c.b16 %v625, %v625
      %v658 = vpack.c.b16 %v626, %v626
      %v659 = vpack.c.b16 %v627, %v627
      %v660 = vpack.c.b16 %v628, %v628
      %v661 = vpack.c.b16 %v629, %v629
      %v662 = vpack.c.b16 %v630, %v630
      %695 = vst [vmem:[%s172] sm:$0xf] %v631
      %696 = vst [vmem:[%s172 + $0x4] sm:$0xf] %v632
      %697 = vst [vmem:[%s172 + $0x8] sm:$0xf] %v633
      %698 = vst [vmem:[%s172 + $0xc] sm:$0xf] %v634
      %699 = vst [vmem:[%s172 + $0x10] sm:$0xf] %v635
      %700 = vst [vmem:[%s172 + $0x14] sm:$0xf] %v636
      %701 = vst [vmem:[%s172 + $0x18] sm:$0xf] %v637
      %702 = vst [vmem:[%s172 + $0x1c] sm:$0xf] %v638
      %703 = vst [vmem:[%s172 + $0x20] sm:$0xf] %v639
      %704 = vst [vmem:[%s172 + $0x24] sm:$0xf] %v640
      %705 = vst [vmem:[%s172 + $0x28] sm:$0xf] %v641
      %706 = vst [vmem:[%s172 + $0x2c] sm:$0xf] %v642
      %707 = vst [vmem:[%s172 + $0x30] sm:$0xf] %v643
      %708 = vst [vmem:[%s172 + $0x34] sm:$0xf] %v644
      %709 = vst [vmem:[%s172 + $0x38] sm:$0xf] %v645
      %710 = vst [vmem:[%s172 + $0x3c] sm:$0xf] %v646
      %711 = vst [vmem:[%s172 + $0x40] sm:$0xf] %v647
      %712 = vst [vmem:[%s172 + $0x44] sm:$0xf] %v648
      %713 = vst [vmem:[%s172 + $0x48] sm:$0xf] %v649
      %714 = vst [vmem:[%s172 + $0x4c] sm:$0xf] %v650
      %715 = vst [vmem:[%s172 + $0x50] sm:$0xf] %v651
      %716 = vst [vmem:[%s172 + $0x54] sm:$0xf] %v652
      %717 = vst [vmem:[%s172 + $0x58] sm:$0xf] %v653
      %718 = vst [vmem:[%s172 + $0x5c] sm:$0xf] %v654
      %719 = vst [vmem:[%s172 + $0x60] sm:$0xf] %v655
      %720 = vst [vmem:[%s172 + $0x64] sm:$0xf] %v656
      %721 = vst [vmem:[%s172 + $0x68] sm:$0xf] %v657
      %722 = vst [vmem:[%s172 + $0x6c] sm:$0xf] %v658
      %723 = vst [vmem:[%s172 + $0x70] sm:$0xf] %v659
      %724 = vst [vmem:[%s172 + $0x74] sm:$0xf] %v660
      %725 = vst [vmem:[%s172 + $0x78] sm:$0xf] %v661
      %726 = vst [vmem:[%s172 + $0x7c] sm:$0xf] %v662
      %s727 = smul.u32 32, %s14
      %p728 = scmp.lt.s32.totalorder %s727, 63
      %s729 = scalar_select %p728, %s727, 63
      %s730 = smul.addr %s729, 4
      %s731 = scalar_lea.vmem %s3, %s730
      // Predicated region
      $region33: #{image_encoder_forward_nchw.4} parent=31 // pred_check
        %p732 = pneg %p100
      $region34: #{image_encoder_forward_nchw.4} parent=31 // pred_check_branch
        %734 = sbr.rel (%p732) target = $region36
      $region35: #{image_encoder_forward_nchw.4} parent=31 // pred_region
        %s735 = smul.u32 32, %s14
      $region36: #{image_encoder_forward_nchw.4} parent=31 // pred_fallthru
        _
    $region32: #{image_encoder_forward_nchw.4} parent=5 // pred_fallthru
      _
    %p736 = scmp.le.s32.totalorder 2, %s9
    // Predicated region
    $region37: #{image_encoder_forward_nchw.4} parent=5 // pred_check
      %p737 = pneg %p736
    $region38: #{image_encoder_forward_nchw.4} parent=5 // pred_check_branch
      %739 = sbr.rel (%p737) target = $region40
    $region39: #{image_encoder_forward_nchw.4} parent=5 // pred_region
      %s740 = ssub.s32 %s9, 2
      // Predicated region
      $region41: #{image_encoder_forward_nchw.4} parent=39 // pred_check
        %p741 = pneg %p106
      $region42: #{image_encoder_forward_nchw.4} parent=39 // pred_check_branch
        %743 = sbr.rel (%p741) target = $region44
      $region43: #{image_encoder_forward_nchw.4} parent=39 // pred_region
        %s744 = smul.u32 32, %s15
        %p745 = scmp.lt.s32.totalorder %s744, 63
        %s746 = scalar_select %p745, %s744, 63
        %s747 = smul.addr %s746, 4
        %s748 = scalar_lea.vmem %s3, %s747
      $region44: #{image_encoder_forward_nchw.4} parent=39 // pred_fallthru
        _
    $region40: #{image_encoder_forward_nchw.4} parent=5 // pred_fallthru
      _
  $region6: #{image_encoder_forward_nchw.4} parent=0 // loop_footer
    %s13 = sadd.s32 1, %s9
  $region7: #{image_encoder_forward_nchw.4} parent=0 // loop_footer_branch
    %8 = sbr.rel target = $region3
  $region8: #{image_encoder_forward_nchw.4} parent=0 // loop_exit
    _

// kernel: image_encoder_forward_nchw.5
$region0: #{image_encoder_forward_nchw.5}
  #allocation0 [shape = 'u32[]', space=smem, size = 0x4, offset = 0x4, fixed_abs, tag = 'smem constant byte address 0x4 - core index']
  #allocation1 [shape = 'u32[144,128]{1,0:T(1,128)}', space=vmem, size = 0x12000, scoped, tag = 'internal scratch']
  %s0 = inlined_call_operand.vmem [shape: bf16[128,128], index: 0, kind: input, shape index: {}]
  %s1 = inlined_call_operand.vmem [shape: bf16[128,128], index: 1, kind: input, shape index: {}]
  %s2 = inlined_call_operand.vmem [shape: f32[1,128], index: 2, kind: input, shape index: {}]
  %s3 = inlined_call_operand.vmem [shape: bf16[128,128], index: 3, kind: output, shape index: {}]
  %s4 = sld [smem:[#allocation0]]
  $region22: #{image_encoder_forward_nchw.5} parent=0
    _
  %s6 = ssub.s32 1, %s4
  %s7 = scalar_select 0, %s6, %s4
  // Predicated region
  $region2: #{image_encoder_forward_nchw.5} parent=0 // pred_check
    _
  $region3: #{image_encoder_forward_nchw.5} parent=0 // pred_check_branch
    %9 = sbr.rel (0) target = $region5
  $region4: #{image_encoder_forward_nchw.5} parent=0 // pred_region
    _
  $region5: #{image_encoder_forward_nchw.5} parent=0 // pred_fallthru
    _
  // Predicated region
  $region6: #{image_encoder_forward_nchw.5} parent=0 // pred_check
    _
  $region7: #{image_encoder_forward_nchw.5} parent=0 // pred_check_branch
    %11 = sbr.rel (0) target = $region9
  $region8: #{image_encoder_forward_nchw.5} parent=0 // pred_region
    _
  $region9: #{image_encoder_forward_nchw.5} parent=0 // pred_fallthru
    _
  // Predicated region
  $region10: #{image_encoder_forward_nchw.5} parent=0 // pred_check
    _
  $region11: #{image_encoder_forward_nchw.5} parent=0 // pred_check_branch
    %13 = sbr.rel (0) target = $region13
  $region12: #{image_encoder_forward_nchw.5} parent=0 // pred_region
    _
  $region13: #{image_encoder_forward_nchw.5} parent=0 // pred_fallthru
    _
  %v15 = vld [vmem:[%s0] sm:$0xf]
  %v16 = vld [vmem:[%s0 + $0x4] sm:$0xf]
  %v17 = vld [vmem:[%s0 + $0x8] sm:$0xf]
  %v18 = vld [vmem:[%s0 + $0xc] sm:$0xf]
  %v19 = vld [vmem:[%s0 + $0x10] sm:$0xf]
  %v20 = vld [vmem:[%s0 + $0x14] sm:$0xf]
  %v21 = vld [vmem:[%s0 + $0x18] sm:$0xf]
  %v22 = vld [vmem:[%s0 + $0x1c] sm:$0xf]
  %v23 = vld [vmem:[%s0 + $0x20] sm:$0xf]
  %v24 = vld [vmem:[%s0 + $0x24] sm:$0xf]
  %v25 = vld [vmem:[%s0 + $0x28] sm:$0xf]
  %v26 = vld [vmem:[%s0 + $0x2c] sm:$0xf]
  %v27 = vld [vmem:[%s0 + $0x30] sm:$0xf]
  %v28 = vld [vmem:[%s0 + $0x34] sm:$0xf]
  %v29 = vld [vmem:[%s0 + $0x38] sm:$0xf]
  %v30 = vld [vmem:[%s0 + $0x3c] sm:$0xf]
  %v31 = vld [vmem:[%s1] sm:$0xf]
  %v32 = vld [vmem:[%s1 + $0x4] sm:$0xf]
  %v33 = vld [vmem:[%s1 + $0x8] sm:$0xf]
  %v34 = vld [vmem:[%s1 + $0xc] sm:$0xf]
  %v35 = vld [vmem:[%s1 + $0x10] sm:$0xf]
  %v36 = vld [vmem:[%s1 + $0x14] sm:$0xf]
  %v37 = vld [vmem:[%s1 + $0x18] sm:$0xf]
  %v38 = vld [vmem:[%s1 + $0x1c] sm:$0xf]
  %v39 = vld [vmem:[%s1 + $0x20] sm:$0xf]
  %v40 = vld [vmem:[%s1 + $0x24] sm:$0xf]
  %v41 = vld [vmem:[%s1 + $0x28] sm:$0xf]
  %v42 = vld [vmem:[%s1 + $0x2c] sm:$0xf]
  %v43 = vld [vmem:[%s1 + $0x30] sm:$0xf]
  %v44 = vld [vmem:[%s1 + $0x34] sm:$0xf]
  %v45 = vld [vmem:[%s1 + $0x38] sm:$0xf]
  %v46 = vld [vmem:[%s1 + $0x3c] sm:$0xf]
  %v47 = vld [vmem:[%s2] sm:$0x1]
  %v49 = vlaneseq
  %v50 = vshrl.u32 %v49, 7
  %v51 = vsub.s32 0, %v50
  %v52 = vrot.slane %v47, %v51
  %v70 = vunpack.c.l.b16 %v15
  %v71 = vunpack.c.l.b16 %v16
  %v72 = vunpack.c.l.b16 %v17
  %v73 = vunpack.c.l.b16 %v18
  %v74 = vunpack.c.l.b16 %v19
  %v75 = vunpack.c.l.b16 %v20
  %v76 = vunpack.c.l.b16 %v21
  %v77 = vunpack.c.l.b16 %v22
  %v78 = vunpack.c.l.b16 %v23
  %v79 = vunpack.c.l.b16 %v24
  %v80 = vunpack.c.l.b16 %v25
  %v81 = vunpack.c.l.b16 %v26
  %v82 = vunpack.c.l.b16 %v27
  %v83 = vunpack.c.l.b16 %v28
  %v84 = vunpack.c.l.b16 %v29
  %v85 = vunpack.c.l.b16 %v30
  %v86 = vpack.c.b16 %v71, %v70
  %v87 = vpack.c.b16 %v73, %v72
  %v88 = vpack.c.b16 %v75, %v74
  %v89 = vpack.c.b16 %v77, %v76
  %v90 = vpack.c.b16 %v79, %v78
  %v91 = vpack.c.b16 %v81, %v80
  %v92 = vpack.c.b16 %v83, %v82
  %v93 = vpack.c.b16 %v85, %v84
  %v118 = vunpack.c.l.b16 %v31
  %v119 = vunpack.c.l.b16 %v32
  %v120 = vunpack.c.l.b16 %v33
  %v121 = vunpack.c.l.b16 %v34
  %v122 = vunpack.c.l.b16 %v35
  %v123 = vunpack.c.l.b16 %v36
  %v124 = vunpack.c.l.b16 %v37
  %v125 = vunpack.c.l.b16 %v38
  %v126 = vunpack.c.l.b16 %v39
  %v127 = vunpack.c.l.b16 %v40
  %v128 = vunpack.c.l.b16 %v41
  %v129 = vunpack.c.l.b16 %v42
  %v130 = vunpack.c.l.b16 %v43
  %v131 = vunpack.c.l.b16 %v44
  %v132 = vunpack.c.l.b16 %v45
  %v133 = vunpack.c.l.b16 %v46
  %v134 = vpack.c.b16 %v119, %v118
  %v135 = vpack.c.b16 %v121, %v120
  %v136 = vpack.c.b16 %v123, %v122
  %v137 = vpack.c.b16 %v125, %v124
  %v138 = vpack.c.b16 %v127, %v126
  %v139 = vpack.c.b16 %v129, %v128
  %v140 = vpack.c.b16 %v131, %v130
  %v141 = vpack.c.b16 %v133, %v132
  %150 = vmatprep.subr.bf16.mxu0 0
  %151 = vmatpush1.bf16.msra.mxu0 %v141
  %152 = vmatprep.subr.bf16.mxu0 0
  %153 = vmatpush1.bf16.msra.mxu0 %v140
  %154 = vmatprep.subr.bf16.mxu0 0
  %155 = vmatpush1.bf16.msra.mxu0 %v139
  %156 = vmatprep.subr.bf16.mxu0 0
  %157 = vmatpush1.bf16.msra.mxu0 %v138
  %158 = vmatprep.subr.bf16.mxu0 0
  %159 = vmatpush1.bf16.msra.mxu0 %v137
  %160 = vmatprep.subr.bf16.mxu0 0
  %161 = vmatpush1.bf16.msra.mxu0 %v136
  %162 = vmatprep.subr.bf16.mxu0 0
  %163 = vmatpush1.bf16.msra.mxu0 %v135
  %164 = vmatprep.subr.bf16.mxu0 0
  %165 = vmatpush1.bf16.msra.mxu0 %v134
  %166 = vmatprep.subr.bf16.mxu0 0
  %167 = vmatpush2.bf16.msra.mxu0 0
  %168 = vmatprep.subr.bf16.mxu0 0
  %169 = vmatpush2.bf16.msra.mxu0 0
  %170 = vmatprep.subr.bf16.mxu0 0
  %171 = vmatpush2.bf16.msra.mxu0 0
  %172 = vmatprep.subr.bf16.mxu0 0
  %173 = vmatpush2.bf16.msra.mxu0 0
  %174 = vmatprep.subr.bf16.mxu0 0
  %175 = vmatpush2.bf16.msra.mxu0 0
  %176 = vmatprep.subr.bf16.mxu0 0
  %177 = vmatpush2.bf16.msra.mxu0 0
  %178 = vmatprep.subr.bf16.mxu0 0
  %179 = vmatpush2.bf16.msra.mxu0 0
  %180 = vmatprep.subr.bf16.mxu0 0
  %181 = vmatpush2.bf16.msra.mxu0 0
  %182 = vmatprep.mubr.bf16.mxu0 0
  %183 = vmatmul.mubr.bf16.gmra.mxu0 %v86
  %v184 = vpop.f32.mrf.mxu0
  %v185 = vadd.f32 %v52, %v184
  %v186 = vpop.f32.mrf.mxu0
  %v187 = vpop.f32.mrf.mxu0
  %v188 = vadd.f32 %v52, %v187
  %v189 = vpop.f32.mrf.mxu0
  %190 = vmatprep.mubr.bf16.mxu0 0
  %191 = vmatmul.mubr.bf16.gmra.mxu0 %v87
  %v192 = vpop.f32.mrf.mxu0
  %v193 = vadd.f32 %v52, %v192
  %v194 = vpop.f32.mrf.mxu0
  %v195 = vpop.f32.mrf.mxu0
  %v196 = vadd.f32 %v52, %v195
  %v197 = vpop.f32.mrf.mxu0
  %198 = vmatprep.mubr.bf16.mxu0 0
  %199 = vmatmul.mubr.bf16.gmra.mxu0 %v88
  %v200 = vpop.f32.mrf.mxu0
  %v201 = vadd.f32 %v52, %v200
  %v202 = vpop.f32.mrf.mxu0
  %v203 = vpop.f32.mrf.mxu0
  %v204 = vadd.f32 %v52, %v203
  %v205 = vpop.f32.mrf.mxu0
  %206 = vmatprep.mubr.bf16.mxu0 0
  %207 = vmatmul.mubr.bf16.gmra.mxu0 %v89
  %v208 = vpop.f32.mrf.mxu0
  %v209 = vadd.f32 %v52, %v208
  %v210 = vpop.f32.mrf.mxu0
  %v211 = vpop.f32.mrf.mxu0
  %v212 = vadd.f32 %v52, %v211
  %v213 = vpop.f32.mrf.mxu0
  %214 = vmatprep.mubr.bf16.mxu0 0
  %215 = vmatmul.mubr.bf16.gmra.mxu0 %v90
  %v216 = vpop.f32.mrf.mxu0
  %v217 = vadd.f32 %v52, %v216
  %v218 = vpop.f32.mrf.mxu0
  %v219 = vpop.f32.mrf.mxu0
  %v220 = vadd.f32 %v52, %v219
  %v221 = vpop.f32.mrf.mxu0
  %222 = vmatprep.mubr.bf16.mxu0 0
  %223 = vmatmul.mubr.bf16.gmra.mxu0 %v91
  %v224 = vpop.f32.mrf.mxu0
  %v225 = vadd.f32 %v52, %v224
  %v226 = vpop.f32.mrf.mxu0
  %v227 = vpop.f32.mrf.mxu0
  %v228 = vadd.f32 %v52, %v227
  %v229 = vpop.f32.mrf.mxu0
  %230 = vmatprep.mubr.bf16.mxu0 0
  %231 = vmatmul.mubr.bf16.gmra.mxu0 %v92
  %v232 = vpop.f32.mrf.mxu0
  %v233 = vadd.f32 %v52, %v232
  %v234 = vpop.f32.mrf.mxu0
  %v235 = vpop.f32.mrf.mxu0
  %v236 = vadd.f32 %v52, %v235
  %v237 = vpop.f32.mrf.mxu0
  %238 = vmatprep.mubr.bf16.mxu0 0
  %239 = vmatmul.mubr.bf16.gmra.mxu0 %v93
  %v240 = vpop.f32.mrf.mxu0
  %v241 = vadd.f32 %v52, %v240
  %v242 = vpop.f32.mrf.mxu0
  %v243 = vpop.f32.mrf.mxu0
  %v244 = vadd.f32 %v52, %v243
  %v245 = vpop.f32.mrf.mxu0
  %246 = vdwg.mxu0
  %v247 = vmax.f32 %v185, 0.0
  %v248 = vmax.f32 %v188, 0.0
  %v249 = vmax.f32 %v193, 0.0
  %v250 = vmax.f32 %v196, 0.0
  %v251 = vmax.f32 %v201, 0.0
  %v252 = vmax.f32 %v204, 0.0
  %v253 = vmax.f32 %v209, 0.0
  %v254 = vmax.f32 %v212, 0.0
  %v255 = vmax.f32 %v217, 0.0
  %v256 = vmax.f32 %v220, 0.0
  %v257 = vmax.f32 %v225, 0.0
  %v258 = vmax.f32 %v228, 0.0
  %v259 = vmax.f32 %v233, 0.0
  %v260 = vmax.f32 %v236, 0.0
  %v261 = vmax.f32 %v241, 0.0
  %v262 = vmax.f32 %v244, 0.0
  %v263 = vpack.c.bf16 %v248, %v247
  %v264 = vpack.c.bf16 %v250, %v249
  %v265 = vpack.c.bf16 %v252, %v251
  %v266 = vpack.c.bf16 %v254, %v253
  %v267 = vpack.c.bf16 %v256, %v255
  %v268 = vpack.c.bf16 %v258, %v257
  %v269 = vpack.c.bf16 %v260, %v259
  %v270 = vpack.c.bf16 %v262, %v261
  %v279 = vunpack.c.l.b16 %v263
  %v280 = vunpack.c.h.b16 %v263
  %v281 = vunpack.c.l.b16 %v264
  %v282 = vunpack.c.h.b16 %v264
  %v283 = vunpack.c.l.b16 %v265
  %v284 = vunpack.c.h.b16 %v265
  %v285 = vunpack.c.l.b16 %v266
  %v286 = vunpack.c.h.b16 %v266
  %v287 = vunpack.c.l.b16 %v267
  %v288 = vunpack.c.h.b16 %v267
  %v289 = vunpack.c.l.b16 %v268
  %v290 = vunpack.c.h.b16 %v268
  %v291 = vunpack.c.l.b16 %v269
  %v292 = vunpack.c.h.b16 %v269
  %v293 = vunpack.c.l.b16 %v270
  %v294 = vunpack.c.h.b16 %v270
  %v295 = vpack.c.b16 %v279, %v279
  %v296 = vpack.c.b16 %v280, %v280
  %v297 = vpack.c.b16 %v281, %v281
  %v298 = vpack.c.b16 %v282, %v282
  %v299 = vpack.c.b16 %v283, %v283
  %v300 = vpack.c.b16 %v284, %v284
  %v301 = vpack.c.b16 %v285, %v285
  %v302 = vpack.c.b16 %v286, %v286
  %v303 = vpack.c.b16 %v287, %v287
  %v304 = vpack.c.b16 %v288, %v288
  %v305 = vpack.c.b16 %v289, %v289
  %v306 = vpack.c.b16 %v290, %v290
  %v307 = vpack.c.b16 %v291, %v291
  %v308 = vpack.c.b16 %v292, %v292
  %v309 = vpack.c.b16 %v293, %v293
  %v310 = vpack.c.b16 %v294, %v294
  %327 = vst [vmem:[%s3] sm:$0xf] %v295
  %328 = vst [vmem:[%s3 + $0x4] sm:$0xf] %v296
  %329 = vst [vmem:[%s3 + $0x8] sm:$0xf] %v297
  %330 = vst [vmem:[%s3 + $0xc] sm:$0xf] %v298
  %331 = vst [vmem:[%s3 + $0x10] sm:$0xf] %v299
  %332 = vst [vmem:[%s3 + $0x14] sm:$0xf] %v300
  %333 = vst [vmem:[%s3 + $0x18] sm:$0xf] %v301
  %334 = vst [vmem:[%s3 + $0x1c] sm:$0xf] %v302
  %335 = vst [vmem:[%s3 + $0x20] sm:$0xf] %v303
  %336 = vst [vmem:[%s3 + $0x24] sm:$0xf] %v304
  %337 = vst [vmem:[%s3 + $0x28] sm:$0xf] %v305
  %338 = vst [vmem:[%s3 + $0x2c] sm:$0xf] %v306
  %339 = vst [vmem:[%s3 + $0x30] sm:$0xf] %v307
  %340 = vst [vmem:[%s3 + $0x34] sm:$0xf] %v308
  %341 = vst [vmem:[%s3 + $0x38] sm:$0xf] %v309
  %342 = vst [vmem:[%s3 + $0x3c] sm:$0xf] %v310
  // Predicated region
  $region14: #{image_encoder_forward_nchw.5} parent=0 // pred_check
    _
  $region15: #{image_encoder_forward_nchw.5} parent=0 // pred_check_branch
    %344 = sbr.rel (0) target = $region17
  $region16: #{image_encoder_forward_nchw.5} parent=0 // pred_region
    _
  $region17: #{image_encoder_forward_nchw.5} parent=0 // pred_fallthru
    _
  // Predicated region
  $region18: #{image_encoder_forward_nchw.5} parent=0 // pred_check
    _
  $region19: #{image_encoder_forward_nchw.5} parent=0 // pred_check_branch
    %346 = sbr.rel (0) target = $region21
  $region20: #{image_encoder_forward_nchw.5} parent=0 // pred_region
    _
  $region21: #{image_encoder_forward_nchw.5} parent=0 // pred_fallthru
    _

// kernel: image_encoder_forward_nchw.6
$region0: #{image_encoder_forward_nchw.6}
  #allocation0 [shape = 'u32[]', space=smem, size = 0x4, offset = 0x4, fixed_abs, tag = 'smem constant byte address 0x4 - core index']
  #allocation1 [shape = 'u32[144,128]{1,0:T(1,128)}', space=vmem, size = 0x12000, scoped, tag = 'internal scratch']
  %s0 = inlined_call_operand.vmem [shape: bf16[128,256], index: 0, kind: input, shape index: {}]
  %s1 = inlined_call_operand.vmem [shape: bf16[256,128], index: 1, kind: input, shape index: {}]
  %s2 = inlined_call_operand.vmem [shape: f32[1,128], index: 2, kind: input, shape index: {}]
  %s3 = inlined_call_operand.vmem [shape: bf16[128,128], index: 3, kind: output, shape index: {}]
  %s4 = sld [smem:[#allocation0]]
  $region22: #{image_encoder_forward_nchw.6} parent=0
    _
  %s6 = ssub.s32 1, %s4
  %s7 = scalar_select 0, %s6, %s4
  // Predicated region
  $region2: #{image_encoder_forward_nchw.6} parent=0 // pred_check
    _
  $region3: #{image_encoder_forward_nchw.6} parent=0 // pred_check_branch
    %9 = sbr.rel (0) target = $region5
  $region4: #{image_encoder_forward_nchw.6} parent=0 // pred_region
    _
  $region5: #{image_encoder_forward_nchw.6} parent=0 // pred_fallthru
    _
  // Predicated region
  $region6: #{image_encoder_forward_nchw.6} parent=0 // pred_check
    _
  $region7: #{image_encoder_forward_nchw.6} parent=0 // pred_check_branch
    %11 = sbr.rel (0) target = $region9
  $region8: #{image_encoder_forward_nchw.6} parent=0 // pred_region
    _
  $region9: #{image_encoder_forward_nchw.6} parent=0 // pred_fallthru
    _
  // Predicated region
  $region10: #{image_encoder_forward_nchw.6} parent=0 // pred_check
    _
  $region11: #{image_encoder_forward_nchw.6} parent=0 // pred_check_branch
    %13 = sbr.rel (0) target = $region13
  $region12: #{image_encoder_forward_nchw.6} parent=0 // pred_region
    _
  $region13: #{image_encoder_forward_nchw.6} parent=0 // pred_fallthru
    _
  %v15 = vld [vmem:[%s0] sm:$0xff]
  %v16 = vld [vmem:[%s0 + $0x8] sm:$0xff]
  %v17 = vld [vmem:[%s0 + $0x10] sm:$0xff]
  %v18 = vld [vmem:[%s0 + $0x18] sm:$0xff]
  %v19 = vld [vmem:[%s0 + $0x20] sm:$0xff]
  %v20 = vld [vmem:[%s0 + $0x28] sm:$0xff]
  %v21 = vld [vmem:[%s0 + $0x30] sm:$0xff]
  %v22 = vld [vmem:[%s0 + $0x38] sm:$0xff]
  %v23 = vld [vmem:[%s0 + $0x40] sm:$0xff]
  %v24 = vld [vmem:[%s0 + $0x48] sm:$0xff]
  %v25 = vld [vmem:[%s0 + $0x50] sm:$0xff]
  %v26 = vld [vmem:[%s0 + $0x58] sm:$0xff]
  %v27 = vld [vmem:[%s0 + $0x60] sm:$0xff]
  %v28 = vld [vmem:[%s0 + $0x68] sm:$0xff]
  %v29 = vld [vmem:[%s0 + $0x70] sm:$0xff]
  %v30 = vld [vmem:[%s0 + $0x78] sm:$0xff]
  %v31 = vld [vmem:[%s1] sm:$0xf]
  %v32 = vld [vmem:[%s1 + $0x4] sm:$0xf]
  %v33 = vld [vmem:[%s1 + $0x8] sm:$0xf]
  %v34 = vld [vmem:[%s1 + $0xc] sm:$0xf]
  %v35 = vld [vmem:[%s1 + $0x10] sm:$0xf]
  %v36 = vld [vmem:[%s1 + $0x14] sm:$0xf]
  %v37 = vld [vmem:[%s1 + $0x18] sm:$0xf]
  %v38 = vld [vmem:[%s1 + $0x1c] sm:$0xf]
  %v39 = vld [vmem:[%s1 + $0x20] sm:$0xf]
  %v40 = vld [vmem:[%s1 + $0x24] sm:$0xf]
  %v41 = vld [vmem:[%s1 + $0x28] sm:$0xf]
  %v42 = vld [vmem:[%s1 + $0x2c] sm:$0xf]
  %v43 = vld [vmem:[%s1 + $0x30] sm:$0xf]
  %v44 = vld [vmem:[%s1 + $0x34] sm:$0xf]
  %v45 = vld [vmem:[%s1 + $0x38] sm:$0xf]
  %v46 = vld [vmem:[%s1 + $0x3c] sm:$0xf]
  %v47 = vld [vmem:[%s1 + $0x40] sm:$0xf]
  %v48 = vld [vmem:[%s1 + $0x44] sm:$0xf]
  %v49 = vld [vmem:[%s1 + $0x48] sm:$0xf]
  %v50 = vld [vmem:[%s1 + $0x4c] sm:$0xf]
  %v51 = vld [vmem:[%s1 + $0x50] sm:$0xf]
  %v52 = vld [vmem:[%s1 + $0x54] sm:$0xf]
  %v53 = vld [vmem:[%s1 + $0x58] sm:$0xf]
  %v54 = vld [vmem:[%s1 + $0x5c] sm:$0xf]
  %v55 = vld [vmem:[%s1 + $0x60] sm:$0xf]
  %v56 = vld [vmem:[%s1 + $0x64] sm:$0xf]
  %v57 = vld [vmem:[%s1 + $0x68] sm:$0xf]
  %v58 = vld [vmem:[%s1 + $0x6c] sm:$0xf]
  %v59 = vld [vmem:[%s1 + $0x70] sm:$0xf]
  %v60 = vld [vmem:[%s1 + $0x74] sm:$0xf]
  %v61 = vld [vmem:[%s1 + $0x78] sm:$0xf]
  %v62 = vld [vmem:[%s1 + $0x7c] sm:$0xf]
  %v63 = vld [vmem:[%s2] sm:$0x1]
  %v65 = vlaneseq
  %v66 = vshrl.u32 %v65, 7
  %v67 = vsub.s32 0, %v66
  %v68 = vrot.slane %v63, %v67
  %v86 = vunpack.c.l.b16 %v15
  %v87 = vunpack.c.h.b16 %v15
  %v88 = vunpack.c.l.b16 %v16
  %v89 = vunpack.c.h.b16 %v16
  %v90 = vunpack.c.l.b16 %v17
  %v91 = vunpack.c.h.b16 %v17
  %v92 = vunpack.c.l.b16 %v18
  %v93 = vunpack.c.h.b16 %v18
  %v94 = vunpack.c.l.b16 %v19
  %v95 = vunpack.c.h.b16 %v19
  %v96 = vunpack.c.l.b16 %v20
  %v97 = vunpack.c.h.b16 %v20
  %v98 = vunpack.c.l.b16 %v21
  %v99 = vunpack.c.h.b16 %v21
  %v100 = vunpack.c.l.b16 %v22
  %v101 = vunpack.c.h.b16 %v22
  %v102 = vunpack.c.l.b16 %v23
  %v103 = vunpack.c.h.b16 %v23
  %v104 = vunpack.c.l.b16 %v24
  %v105 = vunpack.c.h.b16 %v24
  %v106 = vunpack.c.l.b16 %v25
  %v107 = vunpack.c.h.b16 %v25
  %v108 = vunpack.c.l.b16 %v26
  %v109 = vunpack.c.h.b16 %v26
  %v110 = vunpack.c.l.b16 %v27
  %v111 = vunpack.c.h.b16 %v27
  %v112 = vunpack.c.l.b16 %v28
  %v113 = vunpack.c.h.b16 %v28
  %v114 = vunpack.c.l.b16 %v29
  %v115 = vunpack.c.h.b16 %v29
  %v116 = vunpack.c.l.b16 %v30
  %v117 = vunpack.c.h.b16 %v30
  %v118 = vpack.c.b16 %v88, %v86
  %v119 = vpack.c.b16 %v89, %v87
  %v120 = vpack.c.b16 %v92, %v90
  %v121 = vpack.c.b16 %v93, %v91
  %v122 = vpack.c.b16 %v96, %v94
  %v123 = vpack.c.b16 %v97, %v95
  %v124 = vpack.c.b16 %v100, %v98
  %v125 = vpack.c.b16 %v101, %v99
  %v126 = vpack.c.b16 %v104, %v102
  %v127 = vpack.c.b16 %v105, %v103
  %v128 = vpack.c.b16 %v108, %v106
  %v129 = vpack.c.b16 %v109, %v107
  %v130 = vpack.c.b16 %v112, %v110
  %v131 = vpack.c.b16 %v113, %v111
  %v132 = vpack.c.b16 %v116, %v114
  %v133 = vpack.c.b16 %v117, %v115
  %v182 = vunpack.c.l.b16 %v31
  %v183 = vunpack.c.l.b16 %v32
  %v184 = vunpack.c.l.b16 %v33
  %v185 = vunpack.c.l.b16 %v34
  %v186 = vunpack.c.l.b16 %v35
  %v187 = vunpack.c.l.b16 %v36
  %v188 = vunpack.c.l.b16 %v37
  %v189 = vunpack.c.l.b16 %v38
  %v190 = vunpack.c.l.b16 %v39
  %v191 = vunpack.c.l.b16 %v40
  %v192 = vunpack.c.l.b16 %v41
  %v193 = vunpack.c.l.b16 %v42
  %v194 = vunpack.c.l.b16 %v43
  %v195 = vunpack.c.l.b16 %v44
  %v196 = vunpack.c.l.b16 %v45
  %v197 = vunpack.c.l.b16 %v46
  %v198 = vunpack.c.l.b16 %v47
  %v199 = vunpack.c.l.b16 %v48
  %v200 = vunpack.c.l.b16 %v49
  %v201 = vunpack.c.l.b16 %v50
  %v202 = vunpack.c.l.b16 %v51
  %v203 = vunpack.c.l.b16 %v52
  %v204 = vunpack.c.l.b16 %v53
  %v205 = vunpack.c.l.b16 %v54
  %v206 = vunpack.c.l.b16 %v55
  %v207 = vunpack.c.l.b16 %v56
  %v208 = vunpack.c.l.b16 %v57
  %v209 = vunpack.c.l.b16 %v58
  %v210 = vunpack.c.l.b16 %v59
  %v211 = vunpack.c.l.b16 %v60
  %v212 = vunpack.c.l.b16 %v61
  %v213 = vunpack.c.l.b16 %v62
  %v214 = vpack.c.b16 %v183, %v182
  %v215 = vpack.c.b16 %v185, %v184
  %v216 = vpack.c.b16 %v187, %v186
  %v217 = vpack.c.b16 %v189, %v188
  %v218 = vpack.c.b16 %v191, %v190
  %v219 = vpack.c.b16 %v193, %v192
  %v220 = vpack.c.b16 %v195, %v194
  %v221 = vpack.c.b16 %v197, %v196
  %v222 = vpack.c.b16 %v199, %v198
  %v223 = vpack.c.b16 %v201, %v200
  %v224 = vpack.c.b16 %v203, %v202
  %v225 = vpack.c.b16 %v205, %v204
  %v226 = vpack.c.b16 %v207, %v206
  %v227 = vpack.c.b16 %v209, %v208
  %v228 = vpack.c.b16 %v211, %v210
  %v229 = vpack.c.b16 %v213, %v212
  %246 = vmatprep.subr.bf16.mxu0 0
  %247 = vmatpush1.bf16.msra.mxu0 %v221
  %248 = vmatprep.subr.bf16.mxu0 0
  %249 = vmatpush1.bf16.msra.mxu0 %v220
  %250 = vmatprep.subr.bf16.mxu0 0
  %251 = vmatpush1.bf16.msra.mxu0 %v219
  %252 = vmatprep.subr.bf16.mxu0 0
  %253 = vmatpush1.bf16.msra.mxu0 %v218
  %254 = vmatprep.subr.bf16.mxu0 0
  %255 = vmatpush1.bf16.msra.mxu0 %v217
  %256 = vmatprep.subr.bf16.mxu0 0
  %257 = vmatpush1.bf16.msra.mxu0 %v216
  %258 = vmatprep.subr.bf16.mxu0 0
  %259 = vmatpush1.bf16.msra.mxu0 %v215
  %260 = vmatprep.subr.bf16.mxu0 0
  %261 = vmatpush1.bf16.msra.mxu0 %v214
  %262 = vmatprep.subr.bf16.mxu0 0
  %263 = vmatpush2.bf16.msra.mxu0 %v229
  %264 = vmatprep.subr.bf16.mxu0 0
  %265 = vmatpush2.bf16.msra.mxu0 %v228
  %266 = vmatprep.subr.bf16.mxu0 0
  %267 = vmatpush2.bf16.msra.mxu0 %v227
  %268 = vmatprep.subr.bf16.mxu0 0
  %269 = vmatpush2.bf16.msra.mxu0 %v226
  %270 = vmatprep.subr.bf16.mxu0 0
  %271 = vmatpush2.bf16.msra.mxu0 %v225
  %272 = vmatprep.subr.bf16.mxu0 0
  %273 = vmatpush2.bf16.msra.mxu0 %v224
  %274 = vmatprep.subr.bf16.mxu0 0
  %275 = vmatpush2.bf16.msra.mxu0 %v223
  %276 = vmatprep.subr.bf16.mxu0 0
  %277 = vmatpush2.bf16.msra.mxu0 %v222
  %278 = vmatprep.mubr.bf16.mxu0 %v119
  %279 = vmatmul.mubr.bf16.gmra.mxu0 %v118
  %v280 = vpop.f32.mrf.mxu0
  %v281 = vadd.f32 %v68, %v280
  %v282 = vpop.f32.mrf.mxu0
  %v283 = vpop.f32.mrf.mxu0
  %v284 = vadd.f32 %v68, %v283
  %v285 = vpop.f32.mrf.mxu0
  %286 = vmatprep.mubr.bf16.mxu0 %v121
  %287 = vmatmul.mubr.bf16.gmra.mxu0 %v120
  %v288 = vpop.f32.mrf.mxu0
  %v289 = vadd.f32 %v68, %v288
  %v290 = vpop.f32.mrf.mxu0
  %v291 = vpop.f32.mrf.mxu0
  %v292 = vadd.f32 %v68, %v291
  %v293 = vpop.f32.mrf.mxu0
  %294 = vmatprep.mubr.bf16.mxu0 %v123
  %295 = vmatmul.mubr.bf16.gmra.mxu0 %v122
  %v296 = vpop.f32.mrf.mxu0
  %v297 = vadd.f32 %v68, %v296
  %v298 = vpop.f32.mrf.mxu0
  %v299 = vpop.f32.mrf.mxu0
  %v300 = vadd.f32 %v68, %v299
  %v301 = vpop.f32.mrf.mxu0
  %302 = vmatprep.mubr.bf16.mxu0 %v125
  %303 = vmatmul.mubr.bf16.gmra.mxu0 %v124
  %v304 = vpop.f32.mrf.mxu0
  %v305 = vadd.f32 %v68, %v304
  %v306 = vpop.f32.mrf.mxu0
  %v307 = vpop.f32.mrf.mxu0
  %v308 = vadd.f32 %v68, %v307
  %v309 = vpop.f32.mrf.mxu0
  %310 = vmatprep.mubr.bf16.mxu0 %v127
  %311 = vmatmul.mubr.bf16.gmra.mxu0 %v126
  %v312 = vpop.f32.mrf.mxu0
  %v313 = vadd.f32 %v68, %v312
  %v314 = vpop.f32.mrf.mxu0
  %v315 = vpop.f32.mrf.mxu0
  %v316 = vadd.f32 %v68, %v315
  %v317 = vpop.f32.mrf.mxu0
  %318 = vmatprep.mubr.bf16.mxu0 %v129
  %319 = vmatmul.mubr.bf16.gmra.mxu0 %v128
  %v320 = vpop.f32.mrf.mxu0
  %v321 = vadd.f32 %v68, %v320
  %v322 = vpop.f32.mrf.mxu0
  %v323 = vpop.f32.mrf.mxu0
  %v324 = vadd.f32 %v68, %v323
  %v325 = vpop.f32.mrf.mxu0
  %326 = vmatprep.mubr.bf16.mxu0 %v131
  %327 = vmatmul.mubr.bf16.gmra.mxu0 %v130
  %v328 = vpop.f32.mrf.mxu0
  %v329 = vadd.f32 %v68, %v328
  %v330 = vpop.f32.mrf.mxu0
  %v331 = vpop.f32.mrf.mxu0
  %v332 = vadd.f32 %v68, %v331
  %v333 = vpop.f32.mrf.mxu0
  %334 = vmatprep.mubr.bf16.mxu0 %v133
  %335 = vmatmul.mubr.bf16.gmra.mxu0 %v132
  %v336 = vpop.f32.mrf.mxu0
  %v337 = vadd.f32 %v68, %v336
  %v338 = vpop.f32.mrf.mxu0
  %v339 = vpop.f32.mrf.mxu0
  %v340 = vadd.f32 %v68, %v339
  %v341 = vpop.f32.mrf.mxu0
  %342 = vdwg.mxu0
  %v343 = vmax.f32 %v281, 0.0
  %v344 = vmax.f32 %v284, 0.0
  %v345 = vmax.f32 %v289, 0.0
  %v346 = vmax.f32 %v292, 0.0
  %v347 = vmax.f32 %v297, 0.0
  %v348 = vmax.f32 %v300, 0.0
  %v349 = vmax.f32 %v305, 0.0
  %v350 = vmax.f32 %v308, 0.0
  %v351 = vmax.f32 %v313, 0.0
  %v352 = vmax.f32 %v316, 0.0
  %v353 = vmax.f32 %v321, 0.0
  %v354 = vmax.f32 %v324, 0.0
  %v355 = vmax.f32 %v329, 0.0
  %v356 = vmax.f32 %v332, 0.0
  %v357 = vmax.f32 %v337, 0.0
  %v358 = vmax.f32 %v340, 0.0
  %v359 = vpack.c.bf16 %v344, %v343
  %v360 = vpack.c.bf16 %v346, %v345
  %v361 = vpack.c.bf16 %v348, %v347
  %v362 = vpack.c.bf16 %v350, %v349
  %v363 = vpack.c.bf16 %v352, %v351
  %v364 = vpack.c.bf16 %v354, %v353
  %v365 = vpack.c.bf16 %v356, %v355
  %v366 = vpack.c.bf16 %v358, %v357
  %v375 = vunpack.c.l.b16 %v359
  %v376 = vunpack.c.h.b16 %v359
  %v377 = vunpack.c.l.b16 %v360
  %v378 = vunpack.c.h.b16 %v360
  %v379 = vunpack.c.l.b16 %v361
  %v380 = vunpack.c.h.b16 %v361
  %v381 = vunpack.c.l.b16 %v362
  %v382 = vunpack.c.h.b16 %v362
  %v383 = vunpack.c.l.b16 %v363
  %v384 = vunpack.c.h.b16 %v363
  %v385 = vunpack.c.l.b16 %v364
  %v386 = vunpack.c.h.b16 %v364
  %v387 = vunpack.c.l.b16 %v365
  %v388 = vunpack.c.h.b16 %v365
  %v389 = vunpack.c.l.b16 %v366
  %v390 = vunpack.c.h.b16 %v366
  %v391 = vpack.c.b16 %v375, %v375
  %v392 = vpack.c.b16 %v376, %v376
  %v393 = vpack.c.b16 %v377, %v377
  %v394 = vpack.c.b16 %v378, %v378
  %v395 = vpack.c.b16 %v379, %v379
  %v396 = vpack.c.b16 %v380, %v380
  %v397 = vpack.c.b16 %v381, %v381
  %v398 = vpack.c.b16 %v382, %v382
  %v399 = vpack.c.b16 %v383, %v383
  %v400 = vpack.c.b16 %v384, %v384
  %v401 = vpack.c.b16 %v385, %v385
  %v402 = vpack.c.b16 %v386, %v386
  %v403 = vpack.c.b16 %v387, %v387
  %v404 = vpack.c.b16 %v388, %v388
  %v405 = vpack.c.b16 %v389, %v389
  %v406 = vpack.c.b16 %v390, %v390
  %423 = vst [vmem:[%s3] sm:$0xf] %v391
  %424 = vst [vmem:[%s3 + $0x4] sm:$0xf] %v392
  %425 = vst [vmem:[%s3 + $0x8] sm:$0xf] %v393
  %426 = vst [vmem:[%s3 + $0xc] sm:$0xf] %v394
  %427 = vst [vmem:[%s3 + $0x10] sm:$0xf] %v395
  %428 = vst [vmem:[%s3 + $0x14] sm:$0xf] %v396
  %429 = vst [vmem:[%s3 + $0x18] sm:$0xf] %v397
  %430 = vst [vmem:[%s3 + $0x1c] sm:$0xf] %v398
  %431 = vst [vmem:[%s3 + $0x20] sm:$0xf] %v399
  %432 = vst [vmem:[%s3 + $0x24] sm:$0xf] %v400
  %433 = vst [vmem:[%s3 + $0x28] sm:$0xf] %v401
  %434 = vst [vmem:[%s3 + $0x2c] sm:$0xf] %v402
  %435 = vst [vmem:[%s3 + $0x30] sm:$0xf] %v403
  %436 = vst [vmem:[%s3 + $0x34] sm:$0xf] %v404
  %437 = vst [vmem:[%s3 + $0x38] sm:$0xf] %v405
  %438 = vst [vmem:[%s3 + $0x3c] sm:$0xf] %v406
  // Predicated region
  $region14: #{image_encoder_forward_nchw.6} parent=0 // pred_check
    _
  $region15: #{image_encoder_forward_nchw.6} parent=0 // pred_check_branch
    %440 = sbr.rel (0) target = $region17
  $region16: #{image_encoder_forward_nchw.6} parent=0 // pred_region
    _
  $region17: #{image_encoder_forward_nchw.6} parent=0 // pred_fallthru
    _
  // Predicated region
  $region18: #{image_encoder_forward_nchw.6} parent=0 // pred_check
    _
  $region19: #{image_encoder_forward_nchw.6} parent=0 // pred_check_branch
    %442 = sbr.rel (0) target = $region21
  $region20: #{image_encoder_forward_nchw.6} parent=0 // pred_region
    _
  $region21: #{image_encoder_forward_nchw.6} parent=0 // pred_fallthru
    _

// kernel: image_encoder_forward_nchw.7
$region0: #{image_encoder_forward_nchw.7}
  #allocation0 [shape = 'u32[]', space=smem, size = 0x4, offset = 0x4, fixed_abs, tag = 'smem constant byte address 0x4 - core index']
  #allocation1 [shape = 'u32[144,128]{1,0:T(1,128)}', space=vmem, size = 0x12000, scoped, tag = 'internal scratch']
  %s0 = inlined_call_operand.vmem [shape: bf16[2,16,128], index: 0, kind: input, shape index: {}]
  %s1 = inlined_call_operand.hbm [shape: f32[2,128], index: 1, kind: output, shape index: {}]
  %s2 = sld [smem:[#allocation0]]
  $region22: #{image_encoder_forward_nchw.7} parent=0
    _
  %s4 = ssub.s32 1, %s2
  %s5 = scalar_select 0, %s4, %s2
  $region1: #{image_encoder_forward_nchw.7} parent=0
    #allocation2 [shape = 'u8[1024]{0}', space=vmem, size = 0x400, scoped, tag = 'output window, operand 0, single buffered']
    #allocation3 [shape = 's32[1]{0}', space=sflag, size = 0x4, scoped, tag = 'scoped memory for image_encoder_forward_nchw.7']
    %6 = vsyncpa [#allocation3], 0
    // Predicated region
    $region2: #{image_encoder_forward_nchw.7} parent=1 // pred_check
      _
    $region3: #{image_encoder_forward_nchw.7} parent=1 // pred_check_branch
      %8 = sbr.rel (0) target = $region5
    $region4: #{image_encoder_forward_nchw.7} parent=1 // pred_region
      _
    $region5: #{image_encoder_forward_nchw.7} parent=1 // pred_fallthru
      _
    %p9 = scmp.eq.s32.totalorder 0, 0
    // Predicated region
    $region6: #{image_encoder_forward_nchw.7} parent=1 // pred_check
      %p10 = pneg %p9
    $region7: #{image_encoder_forward_nchw.7} parent=1 // pred_check_branch
      %12 = sbr.rel (%p10) target = $region9
    $region8: #{image_encoder_forward_nchw.7} parent=1 // pred_region
      %13 = vst [vmem:[#allocation2] sm:$0x3] 0.0
    $region9: #{image_encoder_forward_nchw.7} parent=1 // pred_fallthru
      _
    %v14 = vld [vmem:[#allocation2] sm:$0x3]
    %v15 = vld [vmem:[%s0] sm:$0xf]
    %v16 = vld [vmem:[%s0 + $0x4] sm:$0xf]
    %v17 = vld [vmem:[%s0 + $0x8] sm:$0xf]
    %v18 = vld [vmem:[%s0 + $0xc] sm:$0xf]
    %v19 = vunpack.c.l.bf16 %v15
    %v20 = vunpack.c.l.bf16 %v16
    %v21 = vunpack.c.l.bf16 %v17
    %v22 = vunpack.c.l.bf16 %v18
    %v23 = vadd.f32 %v19, %v20
    %v24 = vrot.slane %v23, 4
    %v25 = vadd.f32 %v23, %v24
    %v26 = vrot.slane %v25, 2
    %v27 = vadd.f32 %v25, %v26
    %v28 = vrot.slane %v27, 1
    %v29 = vadd.f32 %v27, %v28
    %v30 = vadd.f32 %v21, %v22
    %v31 = vrot.slane %v30, 4
    %v32 = vadd.f32 %v30, %v31
    %v33 = vrot.slane %v32, 2
    %v34 = vadd.f32 %v32, %v33
    %v35 = vrot.slane %v34, 1
    %v36 = vadd.f32 %v34, %v35
    %vm39 = vcmask 1041409
    %v40 = vsel %vm39, %v36, %v29
    %v42 = vadd.f32 %v14, %v40
    %43 = vst [vmem:[#allocation2] sm:$0x3] %v42
    // Predicated region
    $region10: #{image_encoder_forward_nchw.7} parent=1 // pred_check
      %p44 = pneg %p9
    $region11: #{image_encoder_forward_nchw.7} parent=1 // pred_check_branch
      %46 = sbr.rel (%p44) target = $region13
    $region12: #{image_encoder_forward_nchw.7} parent=1 // pred_region
      %v47 = vld [vmem:[#allocation2] sm:$0x3]
      %v48 = vmul.f32 %v47, 0.0625
      %49 = vst [vmem:[#allocation2] sm:$0x3] %v48
    $region13: #{image_encoder_forward_nchw.7} parent=1 // pred_fallthru
      _
    // Predicated region
    $region14: #{image_encoder_forward_nchw.7} parent=1 // pred_check
      _
    $region15: #{image_encoder_forward_nchw.7} parent=1 // pred_check_branch
      %51 = sbr.rel (0) target = $region17
    $region16: #{image_encoder_forward_nchw.7} parent=1 // pred_region
      %s53 = ssub.s32 32, 32
      %54 = vsyncadd [#allocation3], %s53
      %s56 = sshll.u32 [#allocation2], 4
      %s57 = int_to_ptr.vmem [resolvable:$true] %s56
      %59 = dma.vmem_to_hbm [thread:$0]  %s57, 32, %s1, [#allocation3]
    $region17: #{image_encoder_forward_nchw.7} parent=1 // pred_fallthru
      _
    // Predicated region
    $region18: #{image_encoder_forward_nchw.7} parent=1 // pred_check
      _
    $region19: #{image_encoder_forward_nchw.7} parent=1 // pred_check_branch
      %61 = sbr.rel (0) target = $region21
    $region20: #{image_encoder_forward_nchw.7} parent=1 // pred_region
      %62 = dma.done [#allocation3], 32
    $region21: #{image_encoder_forward_nchw.7} parent=1 // pred_fallthru
      _
    %63 = vsyncpa [#allocation3], 1

</llo_original>
